<compile_context>
chip_gen: v5e
topology: v5e:2x2
jax: 0.10.0
libtpu: 0.0.40
codegen_flags: <defaults>
</compile_context>

<pallas_src>
import functools
import math

import jax
import jax.numpy as jnp
from jax.experimental import pallas as pl
from jax.experimental.pallas import tpu as pltpu


def _hswish(x):
    # HSwish: x * relu6(x + 3) / 6   (f32 VPU math)
    return x * jnp.clip(x + 3.0, 0.0, 6.0) * (1.0 / 6.0)


def _fpn_kernel(*args, num_levels, scales, compute_dtype):
    """Fused FPNUpscale forward for one (batch, H-tile, W-tile) output block."""
    L = num_levels
    x_refs = args[:L]
    w_refs = args[L:2 * L]
    b_refs = args[2 * L:3 * L]
    w_out_ref = args[3 * L]
    b_out_ref = args[3 * L + 1]
    o_ref = args[3 * L + 2]
    acc_ref = args[3 * L + 3]                       # f32 VMEM scratch, fine resolution

    for i in range(L):
        s_t, s_h, s_w = scales[i]
        xb = x_refs[i][0]                           # (tc, hc, wc, cin)
        tc, hc, wc, cin = xb.shape
        # 1x1x1 lateral conv == one merged channel matmul (bf16 MXU, f32 acc).
        lhs = xb.reshape(tc * hc * wc, cin).astype(compute_dtype)
        lat = jnp.dot(lhs, w_refs[i][...].astype(compute_dtype),
                      preferred_element_type=jnp.float32)
        lat = _hswish(lat + b_refs[i][...])         # f32 VPU math
        cmid = lat.shape[-1]
        lat = lat.reshape(tc, hc, wc, cmid)

        # Nearest upsample in T / H: leading-dim broadcasts + reshapes
        # (layout no-ops: the minor (W, C) dims are untouched).
        if s_t > 1:
            lat = jnp.broadcast_to(lat[:, None], (tc, s_t, hc, wc, cmid)
                                   ).reshape(tc * s_t, hc, wc, cmid)
        if s_h > 1:
            tf = lat.shape[0]
            lat = jnp.broadcast_to(lat[:, :, None], (tf, hc, s_h, wc, cmid)
                                   ).reshape(tf, hc * s_h, wc, cmid)

        if i == 0:
            # Level 0 is the finest grid (scale (1,1,1)): dense init of the scratch.
            acc_ref[...] = lat
        elif s_w == 1:
            acc_ref[...] += lat
        else:
            # Nearest upsample in W folded into s_w strided sublane accumulates
            # (fine index k*s_w + j <- coarse index k): no per-column selects,
            # no fine-resolution SSA accumulator to spill.
            for j in range(s_w):
                cur = acc_ref[:, :, pl.ds(j, wc, stride=s_w), :]
                acc_ref[:, :, pl.ds(j, wc, stride=s_w), :] = cur + lat

    # Output 1x1x1 conv on the accumulated fine-resolution laterals.
    acc = acc_ref[...]
    t, h, w, cmid = acc.shape
    y = jnp.dot(acc.reshape(t * h * w, cmid).astype(compute_dtype),
                w_out_ref[...].astype(compute_dtype),
                preferred_element_type=jnp.float32)
    y = _hswish(y + b_out_ref[...])
    o_ref[0] = y.reshape(t, h, w, -1).astype(o_ref.dtype)


def fpn_upscale(inputs, lateral_params, out_params, *, h_tile=None, w_tile=None,
                compute_dtype=jnp.bfloat16):
    """FPNUpscale forward.

    inputs[i]:          (N, T_i, H_i, W_i, Cin_i), level 0 = finest resolution.
    lateral_params[i]:  (W_i: (Cin_i, Cmid), b_i: (1, Cmid))
    out_params:         (W_out: (Cmid, Cout), b_out: (1, Cout))
    returns:            (N, T_0, H_0, W_0, Cout) in the activation dtype.
    """
    num_levels = len(inputs)
    assert num_levels == len(lateral_params) and num_levels >= 1
    N, T0, H0, W0, _ = inputs[0].shape
    w_out, b_out = out_params
    cmid = lateral_params[0][0].shape[1]
    cout = w_out.shape[1]
    act_dtype = jnp.dtype(inputs[0].dtype)       # bf16 activations at the HBM boundary
    out_dtype = act_dtype

    scales = []
    for x in inputs:
        n, ti, hi, wi, _ = x.shape
        assert n == N
        # TODO(synk): non-integer F.interpolate scale factors (fractional nearest
        # resampling) are not supported; FPN levels must be integer multiples.
        assert T0 % ti == 0 and H0 % hi == 0 and W0 % wi == 0
        scales.append((T0 // ti, H0 // hi, W0 // wi))
    assert scales[0] == (1, 1, 1), "level 0 must be the finest pyramid level"

    if w_tile is None:
        w_tile = W0
    assert W0 % w_tile == 0
    for (_, _, s_w) in scales:
        assert w_tile % s_w == 0
        # Keep flattened second-minor dims multiples of 8 so in-kernel reshapes
        # are pure (8,128)-tile views (no hidden Mosaic relayout copies).
        # TODO(synk): pad odd widths instead of asserting.
        assert (w_tile // s_w) % 8 == 0

    # Pre-cast weights (parameters) to the MXU compute dtype once; biases stay f32.
    ws = [w.astype(compute_dtype) for (w, _) in lateral_params]
    bs = [b.astype(jnp.float32) for (_, b) in lateral_params]
    w_out = w_out.astype(compute_dtype)
    b_out = b_out.astype(jnp.float32)
    param_bytes = sum(int(a.size) * jnp.dtype(a.dtype).itemsize
                      for a in ws + bs + [w_out, b_out])

    # ---------- generation-aware VMEM budget & tile selection ----------
    try:
        vmem_cap = int(pltpu.get_tpu_info().vmem_capacity_bytes)
    except Exception:
        vmem_cap = 64 << 20                      # conservative (v7x per-core VMEM)
    budget = max(int(vmem_cap * 0.78), 32 << 20)  # ~50 MiB on v7x, ~100 MiB on v5e/v6e

    def footprint(ht, wt):
        fine = T0 * ht * wt
        b = 0
        for x, (_, s_h, s_w) in zip(inputs, scales):
            _, ti, _, _, ci = x.shape
            b += 2 * ti * (ht // s_h) * (wt // s_w) * ci * jnp.dtype(x.dtype).itemsize
        b += 2 * fine * cout * out_dtype.itemsize        # double-buffered output block
        b += 2 * param_bytes                             # resident weights / biases
        b += fine * cmid * 4                             # f32 accumulator scratch
        b += fine * cmid * (4 + 2)                       # level-0 f32 lateral + bf16 LHS copy
        b += fine * cout * (4 + 2)                       # out-conv f32 result + bf16 staging
        return b

    lcm_sh = 1
    for (_, s_h, _) in scales:
        lcm_sh = lcm_sh * s_h // math.gcd(lcm_sh, s_h)
    if h_tile is None:
        cands = [d for d in range(H0, 0, -1) if H0 % d == 0 and d % lcm_sh == 0]
        h_tile = cands[-1]
        for d in cands:                                   # largest tile that fits
            if footprint(d, w_tile) <= budget:
                h_tile = d
                break
    assert H0 % h_tile == 0 and h_tile % lcm_sh == 0
    vmem_limit = int(budget)

    # ---------- grid & specs ----------
    grid = (N, H0 // h_tile, W0 // w_tile)

    in_specs = []
    for x, (s_t, s_h, s_w) in zip(inputs, scales):
        _, ti, hi, wi, ci = x.shape
        # The index_map does the T/H/W "nearest" block mapping for free:
        # fine tile index h/w maps to coarse tile index h/w of size tile // scale.
        in_specs.append(pl.BlockSpec((1, ti, h_tile // s_h, w_tile // s_w, ci),
                                     lambda n, h, w: (n, 0, h, w, 0)))

    def _full(a):
        nd = a.ndim
        return pl.BlockSpec(a.shape, lambda n, h, w, _nd=nd: (0,) * _nd)

    in_specs += [_full(a) for a in ws + bs + [w_out, b_out]]

    out_specs = pl.BlockSpec((1, T0, h_tile, w_tile, cout),
                             lambda n, h, w: (n, 0, h, w, 0))

    operands = [x.astype(act_dtype) for x in inputs] + ws + bs + [w_out, b_out]

    kernel = functools.partial(_fpn_kernel, num_levels=num_levels,
                               scales=tuple(scales), compute_dtype=compute_dtype)

    return pl.pallas_call(
        kernel,
        out_shape=jax.ShapeDtypeStruct((N, T0, H0, W0, cout), out_dtype),
        grid_spec=pltpu.PrefetchScalarGridSpec(
            num_scalar_prefetch=0,
            grid=grid,
            in_specs=in_specs,
            out_specs=out_specs,
            scratch_shapes=[pltpu.VMEM((T0, h_tile, w_tile, cmid), jnp.float32)],
        ),
        compiler_params=pltpu.CompilerParams(
            dimension_semantics=("parallel", "parallel", "parallel"),
            vmem_limit_bytes=vmem_limit),
    )(*operands)


def ref_fpn_upscale(inputs, lateral_params, out_params, matmul_dtype=None):
    """Pure-JAX reference (same NTHWC layout), mirroring the PyTorch forward.

    matmul_dtype=None     -> full-f32 spec reference.
    matmul_dtype=bfloat16 -> precision-matched to the kernel's MXU policy.
    """
    def mm(x, w):
        if matmul_dtype is not None:
            return jnp.einsum('nthwc,cd->nthwd', x.astype(matmul_dtype),
                              w.astype(matmul_dtype),
                              preferred_element_type=jnp.float32)
        return jnp.einsum('nthwc,cd->nthwd', x.astype(jnp.float32),
                          w.astype(jnp.float32),
                          preferred_element_type=jnp.float32,
                          precision=jax.lax.Precision.HIGHEST)

    laterals = [_hswish(mm(x, w) + b[0].astype(jnp.float32))
                for x, (w, b) in zip(inputs, lateral_params)]
    for i in range(len(laterals) - 1, 0, -1):
        src, trg = laterals[i], laterals[i - 1]
        s_t = trg.shape[1] // src.shape[1]
        s_h = trg.shape[2] // src.shape[2]
        s_w = trg.shape[3] // src.shape[3]
        up = jnp.repeat(jnp.repeat(jnp.repeat(src, s_t, axis=1), s_h, axis=2),
                        s_w, axis=3)
        laterals[i - 1] = trg + up
    w_out, b_out = out_params
    return _hswish(mm(laterals[0], w_out) + b_out[0].astype(jnp.float32))


if __name__ == "__main__":
    # Two pyramid levels (NTHWC): level 0 finest (T=4, 16x16, 64 ch),
    # level 1 coarser (T=2, 8x8, 128 ch).  internal = out = 128 channels so
    # the lane dimension is fully dense; activations are bf16 at HBM.
    N = 2
    level_shapes = [(N, 4, 16, 16, 64), (N, 2, 8, 8, 128)]
    internal_channels, out_channels = 128, 128

    key = jax.random.PRNGKey(0)
    inputs, lateral_params = [], []
    for shape in level_shapes:
        key, k_x, k_w, k_b = jax.random.split(key, 4)
        inputs.append(jax.random.normal(k_x, shape, jnp.float32).astype(jnp.bfloat16))
        w = 0.1 * jax.random.normal(k_w, (shape[-1], internal_channels), jnp.float32)
        b = 0.1 * jax.random.normal(k_b, (1, internal_channels), jnp.float32)
        lateral_params.append((w, b))
    key, k_w, k_b = jax.random.split(key, 3)
    w_out = 0.1 * jax.random.normal(k_w, (internal_channels, out_channels), jnp.float32)
    b_out = 0.1 * jax.random.normal(k_b, (1, out_channels), jnp.float32)
    out_params = (w_out, b_out)

    # h_tile=8 exercises the coarse-H block mapping and gives a 2x2x1 grid.
    out = jax.block_until_ready(
        fpn_upscale(inputs, lateral_params, out_params, h_tile=8))
    assert out.shape == (N, 4, 16, 16, out_channels), out.shape
    assert out.dtype == jnp.bfloat16, out.dtype

    # Tight check against a reference using the same bf16-operand / f32-accum
    # MXU policy (residual error = final bf16 output rounding), plus a loose
    # check against the full-f32 spec reference.
    ref_matched = ref_fpn_upscale(inputs, lateral_params, out_params,
                                  matmul_dtype=jnp.bfloat16)
    ref_f32 = ref_fpn_upscale(inputs, lateral_params, out_params)
    out_f32 = out.astype(jnp.float32)
    err_matched = float(jnp.max(jnp.abs(out_f32 - ref_matched)))
    err_f32 = float(jnp.max(jnp.abs(out_f32 - ref_f32)))
    assert err_matched < 5e-2, f"precision-matched max abs err: {err_matched}"
    assert err_f32 < 1.5e-1, f"f32-spec max abs err: {err_f32}"
    print("KERNEL_OK")
</pallas_src>

<mosaic_0001>
module attributes {stable_mosaic.version = 11 : i64} {
  func.func @_fpn_kernel(%arg0: i32, %arg1: i32, %arg2: i32, %arg3: memref<1x4x8x16x64xbf16, #tpu.memory_space<vmem>>, %arg4: memref<1x2x4x8x128xbf16, #tpu.memory_space<vmem>>, %arg5: memref<64x128xbf16, #tpu.memory_space<vmem>>, %arg6: memref<128x128xbf16, #tpu.memory_space<vmem>>, %arg7: memref<1x128xf32, #tpu.memory_space<vmem>>, %arg8: memref<1x128xf32, #tpu.memory_space<vmem>>, %arg9: memref<128x128xbf16, #tpu.memory_space<vmem>>, %arg10: memref<1x128xf32, #tpu.memory_space<vmem>>, %arg11: memref<1x4x8x16x128xbf16, #tpu.memory_space<vmem>>, %arg12: memref<4x8x16x128xf32, #tpu.memory_space<vmem>>) attributes {dimension_semantics = [#tpu.dimension_semantics<parallel>, #tpu.dimension_semantics<parallel>, #tpu.dimension_semantics<parallel>], iteration_bounds = array<i64: 2, 2, 1>, scalar_prefetch = 0 : i64, scratch_operands = 1 : i64, tpu.core_type = #tpu.core_type<tc>, window_params = [{transform_indices = @transform_0, window_bounds = array<i64: 1, 4, 8, 16, 64>}, {transform_indices = @transform_1, window_bounds = array<i64: 1, 2, 4, 8, 128>}, {pipeline_mode = #tpu.pipeline_mode<synchronous>, transform_indices = @transform_2, window_bounds = array<i64: 64, 128>}, {pipeline_mode = #tpu.pipeline_mode<synchronous>, transform_indices = @transform_3, window_bounds = array<i64: 128, 128>}, {pipeline_mode = #tpu.pipeline_mode<synchronous>, transform_indices = @transform_4, window_bounds = array<i64: 1, 128>}, {pipeline_mode = #tpu.pipeline_mode<synchronous>, transform_indices = @transform_5, window_bounds = array<i64: 1, 128>}, {pipeline_mode = #tpu.pipeline_mode<synchronous>, transform_indices = @transform_6, window_bounds = array<i64: 128, 128>}, {pipeline_mode = #tpu.pipeline_mode<synchronous>, transform_indices = @transform_7, window_bounds = array<i64: 1, 128>}, {transform_indices = @transform_8, window_bounds = array<i64: 1, 4, 8, 16, 128>}]} {
    %c0 = arith.constant 0 : index
    %c0_0 = arith.constant 0 : index
    %c0_1 = arith.constant 0 : index
    %c0_2 = arith.constant 0 : index
    %c0_3 = arith.constant 0 : index
    %0 = vector.load %arg3[%c0, %c0_0, %c0_1, %c0_2, %c0_3] : memref<1x4x8x16x64xbf16, #tpu.memory_space<vmem>>, vector<1x4x8x16x64xbf16>
    %1 = vector.shape_cast %0 : vector<1x4x8x16x64xbf16> to vector<4x8x16x64xbf16>
    %2 = vector.shape_cast %1 : vector<4x8x16x64xbf16> to vector<512x64xbf16>
    %c0_4 = arith.constant 0 : index
    %c0_5 = arith.constant 0 : index
    %3 = vector.load %arg5[%c0_4, %c0_5] : memref<64x128xbf16, #tpu.memory_space<vmem>>, vector<64x128xbf16>
    %cst = arith.constant dense<0.000000e+00> : vector<512x128xf32>
    %4 = tpu.matmul %2, %3, %cst {dimension_numbers = #tpu.dot_dimension_numbers<[1], [0], [0], [1], [0, 0, 1, 1], [], []>} : vector<512x64xbf16>, vector<64x128xbf16>, vector<512x128xf32> -> vector<512x128xf32>
    %c0_6 = arith.constant 0 : index
    %c0_7 = arith.constant 0 : index
    %5 = vector.load %arg7[%c0_6, %c0_7] : memref<1x128xf32, #tpu.memory_space<vmem>>, vector<1x128xf32>
    %6 = vector.broadcast %5 : vector<1x128xf32> to vector<512x128xf32>
    %7 = arith.addf %4, %6 : vector<512x128xf32>
    %cst_8 = arith.constant 3.000000e+00 : f32
    %8 = vector.broadcast %cst_8 : f32 to vector<512x128xf32>
    %9 = arith.addf %7, %8 : vector<512x128xf32>
    %cst_9 = arith.constant 0.000000e+00 : f32
    %cst_10 = arith.constant 6.000000e+00 : f32
    %10 = vector.broadcast %cst_9 : f32 to vector<512x128xf32>
    %11 = arith.maximumf %10, %9 : vector<512x128xf32>
    %12 = vector.broadcast %cst_10 : f32 to vector<512x128xf32>
    %13 = arith.minimumf %12, %11 : vector<512x128xf32>
    %14 = arith.mulf %7, %13 : vector<512x128xf32>
    %cst_11 = arith.constant 0.166666672 : f32
    %15 = vector.broadcast %cst_11 : f32 to vector<512x128xf32>
    %16 = arith.mulf %14, %15 : vector<512x128xf32>
    %17 = vector.shape_cast %16 : vector<512x128xf32> to vector<4x8x16x128xf32>
    %c0_12 = arith.constant 0 : index
    %c0_13 = arith.constant 0 : index
    %c0_14 = arith.constant 0 : index
    %c0_15 = arith.constant 0 : index
    %18 = vector.load %arg12[%c0_12, %c0_13, %c0_14, %c0_15] : memref<4x8x16x128xf32, #tpu.memory_space<vmem>>, vector<4x8x16x128xf32>
    tpu.vector_store %arg12[%c0_12, %c0_13, %c0_14, %c0_15], %17 {strides = array<i32>} : memref<4x8x16x128xf32, #tpu.memory_space<vmem>>, vector<4x8x16x128xf32>,
    %c0_16 = arith.constant 0 : index
    %c0_17 = arith.constant 0 : index
    %c0_18 = arith.constant 0 : index
    %c0_19 = arith.constant 0 : index
    %c0_20 = arith.constant 0 : index
    %19 = vector.load %arg4[%c0_16, %c0_17, %c0_18, %c0_19, %c0_20] : memref<1x2x4x8x128xbf16, #tpu.memory_space<vmem>>, vector<1x2x4x8x128xbf16>
    %20 = vector.shape_cast %19 : vector<1x2x4x8x128xbf16> to vector<2x4x8x128xbf16>
    %21 = vector.shape_cast %20 : vector<2x4x8x128xbf16> to vector<64x128xbf16>
    %c0_21 = arith.constant 0 : index
    %c0_22 = arith.constant 0 : index
    %22 = vector.load %arg6[%c0_21, %c0_22] : memref<128x128xbf16, #tpu.memory_space<vmem>>, vector<128x128xbf16>
    %cst_23 = arith.constant dense<0.000000e+00> : vector<64x128xf32>
    %23 = tpu.matmul %21, %22, %cst_23 {dimension_numbers = #tpu.dot_dimension_numbers<[1], [0], [0], [1], [0, 0, 1, 1], [], []>} : vector<64x128xbf16>, vector<128x128xbf16>, vector<64x128xf32> -> vector<64x128xf32>
    %c0_24 = arith.constant 0 : index
    %c0_25 = arith.constant 0 : index
    %24 = vector.load %arg8[%c0_24, %c0_25] : memref<1x128xf32, #tpu.memory_space<vmem>>, vector<1x128xf32>
    %25 = vector.broadcast %24 : vector<1x128xf32> to vector<64x128xf32>
    %26 = arith.addf %23, %25 : vector<64x128xf32>
    %cst_26 = arith.constant 3.000000e+00 : f32
    %27 = vector.broadcast %cst_26 : f32 to vector<64x128xf32>
    %28 = arith.addf %26, %27 : vector<64x128xf32>
    %cst_27 = arith.constant 0.000000e+00 : f32
    %cst_28 = arith.constant 6.000000e+00 : f32
    %29 = vector.broadcast %cst_27 : f32 to vector<64x128xf32>
    %30 = arith.maximumf %29, %28 : vector<64x128xf32>
    %31 = vector.broadcast %cst_28 : f32 to vector<64x128xf32>
    %32 = arith.minimumf %31, %30 : vector<64x128xf32>
    %33 = arith.mulf %26, %32 : vector<64x128xf32>
    %cst_29 = arith.constant 0.166666672 : f32
    %34 = vector.broadcast %cst_29 : f32 to vector<64x128xf32>
    %35 = arith.mulf %33, %34 : vector<64x128xf32>
    %36 = vector.shape_cast %35 : vector<64x128xf32> to vector<2x4x8x128xf32>
    %37 = vector.shape_cast %36 : vector<2x4x8x128xf32> to vector<2x1x4x8x128xf32>
    %38 = vector.shape_cast %37 : vector<2x1x4x8x128xf32> to vector<2x1x4x8x128xf32>
    %39 = vector.broadcast %38 : vector<2x1x4x8x128xf32> to vector<2x2x4x8x128xf32>
    %40 = vector.shape_cast %39 : vector<2x2x4x8x128xf32> to vector<4x4x8x128xf32>
    %41 = vector.shape_cast %40 : vector<4x4x8x128xf32> to vector<4x4x1x8x128xf32>
    %42 = vector.shape_cast %41 : vector<4x4x1x8x128xf32> to vector<4x4x1x8x128xf32>
    %43 = vector.broadcast %42 : vector<4x4x1x8x128xf32> to vector<4x4x2x8x128xf32>
    %44 = vector.shape_cast %43 : vector<4x4x2x8x128xf32> to vector<4x8x8x128xf32>
    %c0_30 = arith.constant 0 : index
    %c0_31 = arith.constant 0 : index
    %c0_32 = arith.constant 0 : index
    %c0_33 = arith.constant 0 : index
    %45 = tpu.strided_load %arg12[%c0_30, %c0_31, %c0_32, %c0_33] {strides = array<i32: 1, 1, 2, 1>} : memref<4x8x16x128xf32, #tpu.memory_space<vmem>>, vector<4x8x8x128xf32>
    %46 = arith.addf %45, %44 : vector<4x8x8x128xf32>
    %c0_34 = arith.constant 0 : index
    %c0_35 = arith.constant 0 : index
    %c0_36 = arith.constant 0 : index
    %c0_37 = arith.constant 0 : index
    %47 = tpu.strided_load %arg12[%c0_34, %c0_35, %c0_36, %c0_37] {strides = array<i32: 1, 1, 2, 1>} : memref<4x8x16x128xf32, #tpu.memory_space<vmem>>, vector<4x8x8x128xf32>
    tpu.strided_store %arg12[%c0_34, %c0_35, %c0_36, %c0_37], %46 {strides = array<i32: 1, 1, 2, 1>} : memref<4x8x16x128xf32, #tpu.memory_space<vmem>>, vector<4x8x8x128xf32>
    %c0_38 = arith.constant 0 : index
    %c0_39 = arith.constant 0 : index
    %c1 = arith.constant 1 : index
    %c0_40 = arith.constant 0 : index
    %48 = tpu.strided_load %arg12[%c0_38, %c0_39, %c1, %c0_40] {strides = array<i32: 1, 1, 2, 1>} : memref<4x8x16x128xf32, #tpu.memory_space<vmem>>, vector<4x8x8x128xf32>
    %49 = arith.addf %48, %44 : vector<4x8x8x128xf32>
    %c0_41 = arith.constant 0 : index
    %c0_42 = arith.constant 0 : index
    %c1_43 = arith.constant 1 : index
    %c0_44 = arith.constant 0 : index
    %50 = tpu.strided_load %arg12[%c0_41, %c0_42, %c1_43, %c0_44] {strides = array<i32: 1, 1, 2, 1>} : memref<4x8x16x128xf32, #tpu.memory_space<vmem>>, vector<4x8x8x128xf32>
    tpu.strided_store %arg12[%c0_41, %c0_42, %c1_43, %c0_44], %49 {strides = array<i32: 1, 1, 2, 1>} : memref<4x8x16x128xf32, #tpu.memory_space<vmem>>, vector<4x8x8x128xf32>
    %c0_45 = arith.constant 0 : index
    %c0_46 = arith.constant 0 : index
    %c0_47 = arith.constant 0 : index
    %c0_48 = arith.constant 0 : index
    %51 = vector.load %arg12[%c0_45, %c0_46, %c0_47, %c0_48] : memref<4x8x16x128xf32, #tpu.memory_space<vmem>>, vector<4x8x16x128xf32>
    %52 = vector.shape_cast %51 : vector<4x8x16x128xf32> to vector<512x128xf32>
    %53 = arith.truncf %52 : vector<512x128xf32> to vector<512x128xbf16>
    %c0_49 = arith.constant 0 : index
    %c0_50 = arith.constant 0 : index
    %54 = vector.load %arg9[%c0_49, %c0_50] : memref<128x128xbf16, #tpu.memory_space<vmem>>, vector<128x128xbf16>
    %cst_51 = arith.constant dense<0.000000e+00> : vector<512x128xf32>
    %55 = tpu.matmul %53, %54, %cst_51 {dimension_numbers = #tpu.dot_dimension_numbers<[1], [0], [0], [1], [0, 0, 1, 1], [], []>} : vector<512x128xbf16>, vector<128x128xbf16>, vector<512x128xf32> -> vector<512x128xf32>
    %c0_52 = arith.constant 0 : index
    %c0_53 = arith.constant 0 : index
    %56 = vector.load %arg10[%c0_52, %c0_53] : memref<1x128xf32, #tpu.memory_space<vmem>>, vector<1x128xf32>
    %57 = vector.broadcast %56 : vector<1x128xf32> to vector<512x128xf32>
    %58 = arith.addf %55, %57 : vector<512x128xf32>
    %cst_54 = arith.constant 3.000000e+00 : f32
    %59 = vector.broadcast %cst_54 : f32 to vector<512x128xf32>
    %60 = arith.addf %58, %59 : vector<512x128xf32>
    %cst_55 = arith.constant 0.000000e+00 : f32
    %cst_56 = arith.constant 6.000000e+00 : f32
    %61 = vector.broadcast %cst_55 : f32 to vector<512x128xf32>
    %62 = arith.maximumf %61, %60 : vector<512x128xf32>
    %63 = vector.broadcast %cst_56 : f32 to vector<512x128xf32>
    %64 = arith.minimumf %63, %62 : vector<512x128xf32>
    %65 = arith.mulf %58, %64 : vector<512x128xf32>
    %cst_57 = arith.constant 0.166666672 : f32
    %66 = vector.broadcast %cst_57 : f32 to vector<512x128xf32>
    %67 = arith.mulf %65, %66 : vector<512x128xf32>
    %68 = vector.shape_cast %67 : vector<512x128xf32> to vector<4x8x16x128xf32>
    %69 = arith.truncf %68 : vector<4x8x16x128xf32> to vector<4x8x16x128xbf16>
    %c0_58 = arith.constant 0 : index
    %c0_59 = arith.constant 0 : index
    %c0_60 = arith.constant 0 : index
    %c0_61 = arith.constant 0 : index
    %c0_62 = arith.constant 0 : index
    %70 = vector.load %arg11[%c0_58, %c0_59, %c0_60, %c0_61, %c0_62] : memref<1x4x8x16x128xbf16, #tpu.memory_space<vmem>>, vector<1x4x8x16x128xbf16>
    %71 = vector.shape_cast %70 : vector<1x4x8x16x128xbf16> to vector<4x8x16x128xbf16>
    %72 = vector.shape_cast %69 : vector<4x8x16x128xbf16> to vector<1x4x8x16x128xbf16>
    tpu.vector_store %arg11[%c0_58, %c0_59, %c0_60, %c0_61, %c0_62], %72 {strides = array<i32>} : memref<1x4x8x16x128xbf16, #tpu.memory_space<vmem>>, vector<1x4x8x16x128xbf16>,
    return
  }
  func.func @transform_0(%arg0: i32, %arg1: i32, %arg2: i32) -> (i32, i32, i32, i32, i32) {
    %c0_i32 = arith.constant 0 : i32
    %c0_i32_0 = arith.constant 0 : i32
    %c0_i32_1 = arith.constant 0 : i32
    return %arg0, %c0_i32, %arg1, %arg2, %c0_i32_0 : i32, i32, i32, i32, i32
  }
  func.func @transform_1(%arg0: i32, %arg1: i32, %arg2: i32) -> (i32, i32, i32, i32, i32) {
    %c0_i32 = arith.constant 0 : i32
    %c0_i32_0 = arith.constant 0 : i32
    %c0_i32_1 = arith.constant 0 : i32
    return %arg0, %c0_i32, %arg1, %arg2, %c0_i32_0 : i32, i32, i32, i32, i32
  }
  func.func @transform_2(%arg0: i32, %arg1: i32, %arg2: i32) -> (i32, i32) {
    %c0_i32 = arith.constant 0 : i32
    %c0_i32_0 = arith.constant 0 : i32
    %c0_i32_1 = arith.constant 0 : i32
    return %c0_i32, %c0_i32_0 : i32, i32
  }
  func.func @transform_3(%arg0: i32, %arg1: i32, %arg2: i32) -> (i32, i32) {
    %c0_i32 = arith.constant 0 : i32
    %c0_i32_0 = arith.constant 0 : i32
    %c0_i32_1 = arith.constant 0 : i32
    return %c0_i32, %c0_i32_0 : i32, i32
  }
  func.func @transform_4(%arg0: i32, %arg1: i32, %arg2: i32) -> (i32, i32) {
    %c0_i32 = arith.constant 0 : i32
    %c0_i32_0 = arith.constant 0 : i32
    %c0_i32_1 = arith.constant 0 : i32
    return %c0_i32, %c0_i32_0 : i32, i32
  }
  func.func @transform_5(%arg0: i32, %arg1: i32, %arg2: i32) -> (i32, i32) {
    %c0_i32 = arith.constant 0 : i32
    %c0_i32_0 = arith.constant 0 : i32
    %c0_i32_1 = arith.constant 0 : i32
    return %c0_i32, %c0_i32_0 : i32, i32
  }
  func.func @transform_6(%arg0: i32, %arg1: i32, %arg2: i32) -> (i32, i32) {
    %c0_i32 = arith.constant 0 : i32
    %c0_i32_0 = arith.constant 0 : i32
    %c0_i32_1 = arith.constant 0 : i32
    return %c0_i32, %c0_i32_0 : i32, i32
  }
  func.func @transform_7(%arg0: i32, %arg1: i32, %arg2: i32) -> (i32, i32) {
    %c0_i32 = arith.constant 0 : i32
    %c0_i32_0 = arith.constant 0 : i32
    %c0_i32_1 = arith.constant 0 : i32
    return %c0_i32, %c0_i32_0 : i32, i32
  }
  func.func @transform_8(%arg0: i32, %arg1: i32, %arg2: i32) -> (i32, i32, i32, i32, i32) {
    %c0_i32 = arith.constant 0 : i32
    %c0_i32_0 = arith.constant 0 : i32
    %c0_i32_1 = arith.constant 0 : i32
    return %arg0, %c0_i32, %arg1, %arg2, %c0_i32_0 : i32, i32, i32, i32, i32
  }
}

</mosaic_0001>

<llo_original>
// kernel: tpu_custom_call.1
$region0: #{tpu_custom_call.1}
  #allocation0 [shape = 'u32[]', space=smem, size = 0x4, offset = 0x4, fixed_abs, tag = 'smem constant byte address 0x4 - core index']
  #allocation1 [shape = 'u32[72,128]{1,0:T(1,128)}', space=vmem, size = 0x9000, scoped, tag = 'internal scratch']
  #allocation2 [shape = 'f32[4,8,16,128]{3,2,1,0:T(8,128)}', space=vmem, size = 0x40000, scoped, tag = 'scratch operand']
  #allocation13 [shape = 's32[]', space=sflag, size = 0x4, offset = 0, fixed_abs, tag = 'sflag constant byte address 0x0 - dummy sync flag']
  #allocation15 [shape = 's32[]', space=sflag, size = 0x4, offset = 0, fixed_abs, tag = 'sflag constant byte address 0x0 - dummy sync flag']
  #allocation17 [shape = 's32[]', space=sflag, size = 0x4, offset = 0, fixed_abs, tag = 'sflag constant byte address 0x0 - dummy sync flag']
  %s0 = inlined_call_operand.hbm [shape: bf16[2,4,16,16,64], index: 0, kind: input, shape index: {}]
  %s1 = inlined_call_operand.hbm [shape: bf16[2,2,8,8,128], index: 1, kind: input, shape index: {}]
  %s2 = inlined_call_operand.hbm [shape: bf16[64,128], index: 2, kind: input, shape index: {}]
  %s3 = inlined_call_operand.hbm [shape: bf16[128,128], index: 3, kind: input, shape index: {}]
  %s4 = inlined_call_operand.vmem [shape: f32[1,128], index: 4, kind: input, shape index: {}]
  %s5 = inlined_call_operand.vmem [shape: f32[1,128], index: 5, kind: input, shape index: {}]
  %s6 = inlined_call_operand.hbm [shape: bf16[128,128], index: 6, kind: input, shape index: {}]
  %s7 = inlined_call_operand.vmem [shape: f32[1,128], index: 7, kind: input, shape index: {}]
  %s8 = inlined_call_operand.hbm [shape: bf16[2,4,16,16,128], index: 8, kind: output, shape index: {}]
  %s9 = sld [smem:[#allocation0]]
  $region85: #{tpu_custom_call.1} parent=0
    _
  %s11 = ssub.s32 1, %s9
  %s12 = scalar_select 0, %s11, %s9
  $region1: #{tpu_custom_call.1} parent=0
    #allocation3 [shape = 'u8[262144]{0}', space=vmem, size = 0x40000, scoped, tag = 'input window, operand 0']
    #allocation4 [shape = 's32[2]{0}', space=sflag, size = 0x8, scoped, tag = 'scoped memory for tpu_custom_call.1']
    #allocation5 [shape = 's32[2]{0}', space=sflag, size = 0x8, scoped, tag = 'scoped memory for tpu_custom_call.1']
    #allocation6 [shape = 'u8[32768]{0}', space=vmem, size = 0x8000, scoped, tag = 'input window, operand 1']
    #allocation7 [shape = 's32[2]{0}', space=sflag, size = 0x8, scoped, tag = 'scoped memory for tpu_custom_call.1']
    #allocation8 [shape = 'u8[16384]{0}', space=vmem, size = 0x4000, scoped, tag = 'input window, operand 2, single buffered']
    #allocation9 [shape = 'u8[32768]{0}', space=vmem, size = 0x8000, scoped, tag = 'input window, operand 3, single buffered']
    #allocation10 [shape = 's32[1]{0}', space=sflag, size = 0x4, scoped, tag = 'scoped memory for tpu_custom_call.1']
    #allocation11 [shape = 'u8[32768]{0}', space=vmem, size = 0x8000, scoped, tag = 'input window, operand 6, single buffered']
    #allocation12 [shape = 'u8[262144]{0}', space=vmem, size = 0x40000, scoped, tag = 'output window, operand 0']
    %13 = vsyncpa [#allocation4], 0
    %s14 = scalar_lea.sflag [#allocation4], 1
    %15 = vsyncpa %s14, 0
    %16 = vsyncpa [#allocation7], 0
    %s17 = scalar_lea.sflag [#allocation7], 1
    %18 = vsyncpa %s17, 0
    %19 = vsyncpa [#allocation10], 0
    %20 = vsyncpa [#allocation5], 0
    %s21 = scalar_lea.sflag [#allocation5], 1
    %22 = vsyncpa %s21, 0
    loop: start=0, step=1, limit=6
    $region2: #{tpu_custom_call.1} parent=1 // loop_pre_header
      _
    $region3: #{tpu_custom_call.1} parent=1 // loop_header
      %s24 = sphi 0, %s28
      %p25 = scmp.ge.s32.totalorder %s24, 6
      %s31 = sphi 0, %s50
      %s32 = sphi 0, %s46
      %s33 = sphi 0, %s42
      %s34 = sphi 0, %s31
      %s35 = sphi 0, %s32
      %s36 = sphi 0, %s33
      %s37 = sphi 0, %s34
      %s38 = sphi 0, %s35
      %s39 = sphi 0, %s36
      %s57 = sphi 0, %s59
      %s60 = sphi 0, %s57
      %s61 = sphi 0, %s60
      %s77 = sphi 0, %s61
      %s87 = sphi 0, %s89
      %s90 = sphi 0, %s87
      %s91 = sphi 0, %s90
      %s107 = sphi 0, %s91
      %s111 = sphi 0, %s111
      %s113 = sphi 0, %s111
      %s114 = sphi 0, %s113
      %s128 = sphi 0, %s114
      %s132 = sphi 0, %s132
      %s134 = sphi 0, %s132
      %s135 = sphi 0, %s134
      %s149 = sphi 0, %s135
      %s153 = sphi 0, %s153
      %s155 = sphi 0, %s153
      %s156 = sphi 0, %s155
      %s170 = sphi 0, %s156
      %s174 = sphi 0, %s174
      %s176 = sphi 0, %s174
      %s177 = sphi 0, %s176
      %s191 = sphi 0, %s177
      %s195 = sphi 0, %s195
      %s197 = sphi 0, %s195
      %s198 = sphi 0, %s197
      %s212 = sphi 0, %s198
      %s216 = sphi 0, %s216
      %s218 = sphi 0, %s216
      %s219 = sphi 0, %s218
      %s233 = sphi 0, %s219
      %s243 = sphi 0, %s245
      %s246 = sphi 0, %s243
      %s247 = sphi 0, %s246
      %s263 = sphi 0, %s247
    $region4: #{tpu_custom_call.1} parent=1 // loop_header_branch
      %27 = sbr.rel (%p25) target = $region8
    $region5: #{tpu_custom_call.1} parent=1 // loop_body
      %s29 = ssub.s32 %s24, 1
      %s30 = ssub.s32 %s24, 2
      %s40 = sadd.s32 1, %s33
      %p41 = scmp.ge.s32.totalorder %s40, 1
      %s42 = scalar_select %p41, 0, %s40
      %s43 = sadd.s32 1, %s32
      %s44 = scalar_select %p41, %s43, %s32
      %p45 = scmp.ge.s32.totalorder %s44, 2
      %s46 = scalar_select %p45, 0, %s44
      %s47 = sadd.s32 1, %s31
      %s48 = scalar_select %p45, %s47, %s31
      %p49 = scmp.ge.s32.totalorder %s48, 2
      %s50 = scalar_select %p49, 0, %s48
      %s51 = ssub.s32 %s31, %s50
      %s52 = ssub.s32 %s32, %s46
      %s53 = sor.u32 %s51, %s52
      %s54 = ssub.s32 %s33, %s42
      %s55 = sor.u32 %s53, %s54
      %p56 = scmp.eq.s32.totalorder %s55, 0
      %s58 = sadd.s32 %s57, 1
      %s59 = scalar_select %p56, %s57, %s58
      %p62 = pneg %p56
      %p63 = scmp.eq.s32.totalorder %s24, 3
      %p64 = por %p62, %p63
      %p65 = scmp.ne.s32.totalorder %s57, %s60
      %p66 = scmp.eq.s32.totalorder %s24, 0
      %p67 = por %p65, %p66
      %p68 = scmp.ne.s32.totalorder %s57, %s60
      %p69 = scmp.eq.s32.totalorder %s29, 3
      %p70 = por %p68, %p69
      %p71 = scmp.ne.s32.totalorder %s60, %s61
      %p72 = scmp.eq.s32.totalorder %s29, 0
      %p73 = por %p71, %p72
      %p74 = scmp.ne.s32.totalorder %s60, %s61
      %p75 = scmp.eq.s32.totalorder %s30, 3
      %p76 = por %p74, %p75
      %p78 = scmp.ne.s32.totalorder %s61, %s77
      %p79 = scmp.eq.s32.totalorder %s30, 0
      %p80 = por %p78, %p79
      %s81 = ssub.s32 %s31, %s50
      %s82 = ssub.s32 %s32, %s46
      %s83 = sor.u32 %s81, %s82
      %s84 = ssub.s32 %s33, %s42
      %s85 = sor.u32 %s83, %s84
      %p86 = scmp.eq.s32.totalorder %s85, 0
      %s88 = sadd.s32 %s87, 1
      %s89 = scalar_select %p86, %s87, %s88
      %p92 = pneg %p86
      %p93 = scmp.eq.s32.totalorder %s24, 3
      %p94 = por %p92, %p93
      %p95 = scmp.ne.s32.totalorder %s87, %s90
      %p96 = scmp.eq.s32.totalorder %s24, 0
      %p97 = por %p95, %p96
      %p98 = scmp.ne.s32.totalorder %s87, %s90
      %p99 = scmp.eq.s32.totalorder %s29, 3
      %p100 = por %p98, %p99
      %p101 = scmp.ne.s32.totalorder %s90, %s91
      %p102 = scmp.eq.s32.totalorder %s29, 0
      %p103 = por %p101, %p102
      %p104 = scmp.ne.s32.totalorder %s90, %s91
      %p105 = scmp.eq.s32.totalorder %s30, 3
      %p106 = por %p104, %p105
      %p108 = scmp.ne.s32.totalorder %s91, %s107
      %p109 = scmp.eq.s32.totalorder %s30, 0
      %p110 = por %p108, %p109
      %s112 = sadd.s32 %s111, 1
      %p115 = scmp.eq.s32.totalorder %s24, 3
      %p116 = scmp.ne.s32.totalorder %s111, %s113
      %p117 = scmp.eq.s32.totalorder %s24, 0
      %p118 = por %p116, %p117
      %p119 = scmp.ne.s32.totalorder %s111, %s113
      %p120 = scmp.eq.s32.totalorder %s29, 3
      %p121 = por %p119, %p120
      %p122 = scmp.ne.s32.totalorder %s113, %s114
      %p123 = scmp.eq.s32.totalorder %s29, 0
      %p124 = por %p122, %p123
      %p125 = scmp.ne.s32.totalorder %s113, %s114
      %p126 = scmp.eq.s32.totalorder %s30, 3
      %p127 = por %p125, %p126
      %p129 = scmp.ne.s32.totalorder %s114, %s128
      %p130 = scmp.eq.s32.totalorder %s30, 0
      %p131 = por %p129, %p130
      %s133 = sadd.s32 %s132, 1
      %p136 = scmp.eq.s32.totalorder %s24, 3
      %p137 = scmp.ne.s32.totalorder %s132, %s134
      %p138 = scmp.eq.s32.totalorder %s24, 0
      %p139 = por %p137, %p138
      %p140 = scmp.ne.s32.totalorder %s132, %s134
      %p141 = scmp.eq.s32.totalorder %s29, 3
      %p142 = por %p140, %p141
      %p143 = scmp.ne.s32.totalorder %s134, %s135
      %p144 = scmp.eq.s32.totalorder %s29, 0
      %p145 = por %p143, %p144
      %p146 = scmp.ne.s32.totalorder %s134, %s135
      %p147 = scmp.eq.s32.totalorder %s30, 3
      %p148 = por %p146, %p147
      %p150 = scmp.ne.s32.totalorder %s135, %s149
      %p151 = scmp.eq.s32.totalorder %s30, 0
      %p152 = por %p150, %p151
      %s154 = sadd.s32 %s153, 1
      %p157 = scmp.eq.s32.totalorder %s24, 3
      %p158 = scmp.ne.s32.totalorder %s153, %s155
      %p159 = scmp.eq.s32.totalorder %s24, 0
      %p160 = por %p158, %p159
      %p161 = scmp.ne.s32.totalorder %s153, %s155
      %p162 = scmp.eq.s32.totalorder %s29, 3
      %p163 = por %p161, %p162
      %p164 = scmp.ne.s32.totalorder %s155, %s156
      %p165 = scmp.eq.s32.totalorder %s29, 0
      %p166 = por %p164, %p165
      %p167 = scmp.ne.s32.totalorder %s155, %s156
      %p168 = scmp.eq.s32.totalorder %s30, 3
      %p169 = por %p167, %p168
      %p171 = scmp.ne.s32.totalorder %s156, %s170
      %p172 = scmp.eq.s32.totalorder %s30, 0
      %p173 = por %p171, %p172
      %s175 = sadd.s32 %s174, 1
      %p178 = scmp.eq.s32.totalorder %s24, 3
      %p179 = scmp.ne.s32.totalorder %s174, %s176
      %p180 = scmp.eq.s32.totalorder %s24, 0
      %p181 = por %p179, %p180
      %p182 = scmp.ne.s32.totalorder %s174, %s176
      %p183 = scmp.eq.s32.totalorder %s29, 3
      %p184 = por %p182, %p183
      %p185 = scmp.ne.s32.totalorder %s176, %s177
      %p186 = scmp.eq.s32.totalorder %s29, 0
      %p187 = por %p185, %p186
      %p188 = scmp.ne.s32.totalorder %s176, %s177
      %p189 = scmp.eq.s32.totalorder %s30, 3
      %p190 = por %p188, %p189
      %p192 = scmp.ne.s32.totalorder %s177, %s191
      %p193 = scmp.eq.s32.totalorder %s30, 0
      %p194 = por %p192, %p193
      %s196 = sadd.s32 %s195, 1
      %p199 = scmp.eq.s32.totalorder %s24, 3
      %p200 = scmp.ne.s32.totalorder %s195, %s197
      %p201 = scmp.eq.s32.totalorder %s24, 0
      %p202 = por %p200, %p201
      %p203 = scmp.ne.s32.totalorder %s195, %s197
      %p204 = scmp.eq.s32.totalorder %s29, 3
      %p205 = por %p203, %p204
      %p206 = scmp.ne.s32.totalorder %s197, %s198
      %p207 = scmp.eq.s32.totalorder %s29, 0
      %p208 = por %p206, %p207
      %p209 = scmp.ne.s32.totalorder %s197, %s198
      %p210 = scmp.eq.s32.totalorder %s30, 3
      %p211 = por %p209, %p210
      %p213 = scmp.ne.s32.totalorder %s198, %s212
      %p214 = scmp.eq.s32.totalorder %s30, 0
      %p215 = por %p213, %p214
      %s217 = sadd.s32 %s216, 1
      %p220 = scmp.eq.s32.totalorder %s24, 3
      %p221 = scmp.ne.s32.totalorder %s216, %s218
      %p222 = scmp.eq.s32.totalorder %s24, 0
      %p223 = por %p221, %p222
      %p224 = scmp.ne.s32.totalorder %s216, %s218
      %p225 = scmp.eq.s32.totalorder %s29, 3
      %p226 = por %p224, %p225
      %p227 = scmp.ne.s32.totalorder %s218, %s219
      %p228 = scmp.eq.s32.totalorder %s29, 0
      %p229 = por %p227, %p228
      %p230 = scmp.ne.s32.totalorder %s218, %s219
      %p231 = scmp.eq.s32.totalorder %s30, 3
      %p232 = por %p230, %p231
      %p234 = scmp.ne.s32.totalorder %s219, %s233
      %p235 = scmp.eq.s32.totalorder %s30, 0
      %p236 = por %p234, %p235
      %s237 = ssub.s32 %s31, %s50
      %s238 = ssub.s32 %s32, %s46
      %s239 = sor.u32 %s237, %s238
      %s240 = ssub.s32 %s33, %s42
      %s241 = sor.u32 %s239, %s240
      %p242 = scmp.eq.s32.totalorder %s241, 0
      %s244 = sadd.s32 %s243, 1
      %s245 = scalar_select %p242, %s243, %s244
      %p248 = pneg %p242
      %p249 = scmp.eq.s32.totalorder %s24, 3
      %p250 = por %p248, %p249
      %p251 = scmp.ne.s32.totalorder %s243, %s246
      %p252 = scmp.eq.s32.totalorder %s24, 0
      %p253 = por %p251, %p252
      %p254 = scmp.ne.s32.totalorder %s243, %s246
      %p255 = scmp.eq.s32.totalorder %s29, 3
      %p256 = por %p254, %p255
      %p257 = scmp.ne.s32.totalorder %s246, %s247
      %p258 = scmp.eq.s32.totalorder %s29, 0
      %p259 = por %p257, %p258
      %p260 = scmp.ne.s32.totalorder %s246, %s247
      %p261 = scmp.eq.s32.totalorder %s30, 3
      %p262 = por %p260, %p261
      %p264 = scmp.ne.s32.totalorder %s247, %s263
      %p265 = scmp.eq.s32.totalorder %s30, 0
      %p266 = por %p264, %p265
      %p267 = scmp.le.s32.totalorder 1, %s24
      %p268 = scmp.lt.s32.totalorder %s24, 5
      %p269 = pnand %p267, %p268
      %p270 = pneg %p269
      // Predicated region
      $region9: #{tpu_custom_call.1} parent=5 // pred_check
        _
      $region10: #{tpu_custom_call.1} parent=5 // pred_check_branch
        %272 = sbr.rel (%p269) target = $region12
      $region11: #{tpu_custom_call.1} parent=5 // pred_region
        %s273 = ssub.s32 %s24, 1
        // Predicated region
        $region13: #{tpu_custom_call.1} parent=11 // pred_check
          %p274 = pneg %p124
        $region14: #{tpu_custom_call.1} parent=11 // pred_check_branch
          %276 = sbr.rel (%p274) target = $region16
        $region15: #{tpu_custom_call.1} parent=11 // pred_region
          %278 = vsyncadd [#allocation7], 0
          %s279 = sshll.u32 %s2, 4
          %s280 = int_to_ptr.hbm [resolvable:$true] %s279
          %s281 = sshll.u32 [#allocation8], 4
          %s282 = int_to_ptr.vmem [resolvable:$true] %s281
          %287 = dma.hbm_to_vmem [thread:$0]  %s280, 512, %s282, [#allocation7], 64, 64, 4
        $region16: #{tpu_custom_call.1} parent=11 // pred_fallthru
          _
        // Predicated region
        $region17: #{tpu_custom_call.1} parent=11 // pred_check
          %p288 = pneg %p145
        $region18: #{tpu_custom_call.1} parent=11 // pred_check_branch
          %290 = sbr.rel (%p288) target = $region20
        $region19: #{tpu_custom_call.1} parent=11 // pred_region
          %292 = vsyncadd [#allocation10], 0
          %s293 = sshll.u32 %s3, 4
          %s294 = int_to_ptr.hbm [resolvable:$true] %s293
          %s295 = sshll.u32 [#allocation9], 4
          %s296 = int_to_ptr.vmem [resolvable:$true] %s295
          %301 = dma.hbm_to_vmem [thread:$0]  %s294, 1024, %s296, [#allocation10], 64, 64, 4
        $region20: #{tpu_custom_call.1} parent=11 // pred_fallthru
          _
        // Predicated region
        $region21: #{tpu_custom_call.1} parent=11 // pred_check
          %p302 = pneg %p166
        $region22: #{tpu_custom_call.1} parent=11 // pred_check_branch
          %304 = sbr.rel (%p302) target = $region24
        $region23: #{tpu_custom_call.1} parent=11 // pred_region
          _
        $region24: #{tpu_custom_call.1} parent=11 // pred_fallthru
          _
        // Predicated region
        $region25: #{tpu_custom_call.1} parent=11 // pred_check
          %p305 = pneg %p187
        $region26: #{tpu_custom_call.1} parent=11 // pred_check_branch
          %307 = sbr.rel (%p305) target = $region28
        $region27: #{tpu_custom_call.1} parent=11 // pred_region
          _
        $region28: #{tpu_custom_call.1} parent=11 // pred_fallthru
          _
        // Predicated region
        $region29: #{tpu_custom_call.1} parent=11 // pred_check
          %p308 = pneg %p208
        $region30: #{tpu_custom_call.1} parent=11 // pred_check_branch
          %310 = sbr.rel (%p308) target = $region32
        $region31: #{tpu_custom_call.1} parent=11 // pred_region
          %312 = vsyncadd [#allocation10], 0
          %s313 = sshll.u32 %s6, 4
          %s314 = int_to_ptr.hbm [resolvable:$true] %s313
          %s315 = sshll.u32 [#allocation11], 4
          %s316 = int_to_ptr.vmem [resolvable:$true] %s315
          %321 = dma.hbm_to_vmem [thread:$0]  %s314, 1024, %s316, [#allocation10], 64, 64, 4
        $region32: #{tpu_custom_call.1} parent=11 // pred_fallthru
          _
        // Predicated region
        $region33: #{tpu_custom_call.1} parent=11 // pred_check
          %p322 = pneg %p229
        $region34: #{tpu_custom_call.1} parent=11 // pred_check_branch
          %324 = sbr.rel (%p322) target = $region36
        $region35: #{tpu_custom_call.1} parent=11 // pred_region
          _
        $region36: #{tpu_custom_call.1} parent=11 // pred_fallthru
          _
      $region12: #{tpu_custom_call.1} parent=5 // pred_fallthru
        _
      %p325 = scmp.lt.s32.totalorder %s24, 4
      // Predicated region
      $region37: #{tpu_custom_call.1} parent=5 // pred_check
        %p326 = pneg %p325
      $region38: #{tpu_custom_call.1} parent=5 // pred_check_branch
        %328 = sbr.rel (%p326) target = $region40
      $region39: #{tpu_custom_call.1} parent=5 // pred_region
        // Predicated region
        $region41: #{tpu_custom_call.1} parent=39 // pred_check
          %p329 = pneg %p67
        $region42: #{tpu_custom_call.1} parent=39 // pred_check_branch
          %331 = sbr.rel (%p329) target = $region44
        $region43: #{tpu_custom_call.1} parent=39 // pred_region
          #allocation14 [shape = 'u32[6]{0}', space=smem, size = 0x18, scoped, tag = 'DMA stride descriptor']
          %s332 = sand.u32 %s57, 1
          %s333 = scalar_lea.sflag [#allocation4], %s332
          %s334 = sand.u32 %s57, 1
          %s335 = smul.addr %s334, 256
          %s336 = scalar_lea.vmem [#allocation3], %s335
          %s337 = smul.u32 8, %s32
          %s338 = smul.u32 2, %s33
          %340 = vsyncadd %s333, 0
          %s341 = smul.addr %s337, 2
          %s342 = sadd.s32 %s338, %s341
          %s343 = smul.addr %s31, 128
          %s344 = sadd.s32 %s342, %s343
          %s345 = smul.addr %s344, 4
          %s346 = scalar_lea.hbm %s0, %s345
          %s348 = sshll.u32 1, 14
          %s349 = sxor.u32 4294967295, %s348
          %s351 = sld [smem:[#allocation0]]
          %s352 = sadd.s32 2, %s351
          %s354 = sshll.u32 7, 26
          %s355 = sxor.u32 4294967295, %s354
          %s356 = sand.u32 0, %s355
          %s357 = sshll.u32 %s352, 26
          %s358 = sor.u32 %s356, %s357
          %s359 = sshll.u32 %s346, 4
          %s360 = int_to_ptr.hbm [resolvable:$true] %s359
          %s361 = sshll.u32 %s336, 4
          %s362 = int_to_ptr.vmem [resolvable:$true] %s361
          %368 = sst [smem:[#allocation14]] 2048
          %s369 = scalar_lea.smem [#allocation14], 1
          %370 = sst [smem:[%s369]] 1024
          %s371 = scalar_lea.smem [#allocation14], 2
          %372 = sst [smem:[%s371]] 16
          %s373 = scalar_lea.smem [#allocation14], 3
          %374 = sst [smem:[%s373]] 64
          %s375 = scalar_lea.smem [#allocation14], 4
          %376 = sst [smem:[%s375]] 64
          %s377 = scalar_lea.smem [#allocation14], 5
          %378 = sst [smem:[%s377]] 4
          %380 = dma.general %s360, 4096, %s362, %s333, [#allocation13], [#allocation14], %s358, 0
        $region44: #{tpu_custom_call.1} parent=39 // pred_fallthru
          _
        // Predicated region
        $region45: #{tpu_custom_call.1} parent=39 // pred_check
          %p381 = pneg %p97
        $region46: #{tpu_custom_call.1} parent=39 // pred_check_branch
          %383 = sbr.rel (%p381) target = $region48
        $region47: #{tpu_custom_call.1} parent=39 // pred_region
          #allocation16 [shape = 'u32[6]{0}', space=smem, size = 0x18, scoped, tag = 'DMA stride descriptor']
          %s384 = sand.u32 %s24, 1
          %s385 = scalar_lea.sflag [#allocation7], %s384
          %s386 = sand.u32 %s87, 1
          %s387 = smul.addr %s386, 32
          %s388 = scalar_lea.vmem [#allocation6], %s387
          %s389 = smul.u32 4, %s32
          %391 = vsyncadd %s385, 0
          %s392 = sadd.s32 %s33, %s389
          %s393 = smul.addr %s31, 16
          %s394 = sadd.s32 %s392, %s393
          %s395 = smul.addr %s394, 4
          %s396 = scalar_lea.hbm %s1, %s395
          %s398 = sshll.u32 1, 14
          %s399 = sxor.u32 4294967295, %s398
          %s401 = sld [smem:[#allocation0]]
          %s402 = sadd.s32 2, %s401
          %s404 = sshll.u32 7, 26
          %s405 = sxor.u32 4294967295, %s404
          %s406 = sand.u32 0, %s405
          %s407 = sshll.u32 %s402, 26
          %s408 = sor.u32 %s406, %s407
          %s409 = sshll.u32 %s396, 4
          %s410 = int_to_ptr.hbm [resolvable:$true] %s409
          %s411 = sshll.u32 %s388, 4
          %s412 = int_to_ptr.vmem [resolvable:$true] %s411
          %418 = sst [smem:[#allocation16]] 512
          %s419 = scalar_lea.smem [#allocation16], 1
          %420 = sst [smem:[%s419]] 256
          %s421 = scalar_lea.smem [#allocation16], 2
          %422 = sst [smem:[%s421]] 4
          %s423 = scalar_lea.smem [#allocation16], 3
          %424 = sst [smem:[%s423]] 64
          %s425 = scalar_lea.smem [#allocation16], 4
          %426 = sst [smem:[%s425]] 64
          %s427 = scalar_lea.smem [#allocation16], 5
          %428 = sst [smem:[%s427]] 4
          %430 = dma.general %s410, 512, %s412, %s385, [#allocation15], [#allocation16], %s408, 0
        $region48: #{tpu_custom_call.1} parent=39 // pred_fallthru
          _
      $region40: #{tpu_custom_call.1} parent=5 // pred_fallthru
        _
      %p431 = scmp.le.s32.totalorder 1, %s24
      %p432 = scmp.lt.s32.totalorder %s24, 5
      %p433 = pnand %p431, %p432
      %p434 = pneg %p433
      // Predicated region
      $region49: #{tpu_custom_call.1} parent=5 // pred_check
        _
      $region50: #{tpu_custom_call.1} parent=5 // pred_check_branch
        %436 = sbr.rel (%p433) target = $region52
      $region51: #{tpu_custom_call.1} parent=5 // pred_region
        %s437 = ssub.s32 %s24, 1
        %s438 = sand.u32 %s60, 1
        %s439 = scalar_lea.sflag [#allocation4], %s438
        %s440 = sand.u32 %s60, 1
        %s441 = smul.addr %s440, 256
        %s442 = scalar_lea.vmem [#allocation3], %s441
        // Predicated region
        $region53: #{tpu_custom_call.1} parent=51 // pred_check
          %p443 = pneg %p73
        $region54: #{tpu_custom_call.1} parent=51 // pred_check_branch
          %445 = sbr.rel (%p443) target = $region56
        $region55: #{tpu_custom_call.1} parent=51 // pred_region
          %447 = dma.done %s439, 4096
        $region56: #{tpu_custom_call.1} parent=51 // pred_fallthru
          _
        %s448 = sand.u32 %s29, 1
        %s449 = scalar_lea.sflag [#allocation7], %s448
        %s450 = sand.u32 %s90, 1
        %s451 = smul.addr %s450, 32
        %s452 = scalar_lea.vmem [#allocation6], %s451
        // Predicated region
        $region57: #{tpu_custom_call.1} parent=51 // pred_check
          %p453 = pneg %p103
        $region58: #{tpu_custom_call.1} parent=51 // pred_check_branch
          %455 = sbr.rel (%p453) target = $region60
        $region59: #{tpu_custom_call.1} parent=51 // pred_region
          %457 = dma.done %s449, 512
        $region60: #{tpu_custom_call.1} parent=51 // pred_fallthru
          _
        // Predicated region
        $region61: #{tpu_custom_call.1} parent=51 // pred_check
          %p458 = pneg %p124
        $region62: #{tpu_custom_call.1} parent=51 // pred_check_branch
          %460 = sbr.rel (%p458) target = $region64
        $region63: #{tpu_custom_call.1} parent=51 // pred_region
          %462 = dma.done [#allocation7], 512
        $region64: #{tpu_custom_call.1} parent=51 // pred_fallthru
          _
        // Predicated region
        $region65: #{tpu_custom_call.1} parent=51 // pred_check
          %p463 = pneg %p145
        $region66: #{tpu_custom_call.1} parent=51 // pred_check_branch
          %465 = sbr.rel (%p463) target = $region68
        $region67: #{tpu_custom_call.1} parent=51 // pred_region
          %467 = dma.done [#allocation10], 1024
        $region68: #{tpu_custom_call.1} parent=51 // pred_fallthru
          _
        // Predicated region
        $region69: #{tpu_custom_call.1} parent=51 // pred_check
          %p468 = pneg %p208
        $region70: #{tpu_custom_call.1} parent=51 // pred_check_branch
          %470 = sbr.rel (%p468) target = $region72
        $region71: #{tpu_custom_call.1} parent=51 // pred_region
          %472 = dma.done [#allocation10], 1024
        $region72: #{tpu_custom_call.1} parent=51 // pred_fallthru
          _
        %s473 = sand.u32 %s60, 1
        %s474 = scalar_lea.sflag [#allocation4], %s473
        %s475 = sand.u32 %s60, 1
        %s476 = smul.addr %s475, 256
        %s477 = scalar_lea.vmem [#allocation3], %s476
        %p478 = pneg %p73
        %p479 = pneg %p70
        %s480 = sand.u32 %s29, 1
        %s481 = scalar_lea.sflag [#allocation7], %s480
        %s482 = sand.u32 %s90, 1
        %s483 = smul.addr %s482, 32
        %s484 = scalar_lea.vmem [#allocation6], %s483
        %p485 = pneg %p103
        %p486 = pneg %p100
        %p487 = pneg %p124
        %p488 = pneg %p121
        %p489 = pneg %p145
        %p490 = pneg %p142
        %p491 = pneg %p166
        %p492 = pneg %p163
        %p493 = pneg %p187
        %p494 = pneg %p184
        %p495 = pneg %p208
        %p496 = pneg %p205
        %p497 = pneg %p229
        %p498 = pneg %p226
        %p499 = pneg %p259
        %p500 = pneg %p256
        %s501 = sand.u32 %s246, 1
        %s502 = scalar_lea.sflag [#allocation5], %s501
        %s503 = sand.u32 %s246, 1
        %s504 = smul.addr %s503, 256
        %s505 = scalar_lea.vmem [#allocation12], %s504
        %s506 = smul.u32 8, %s35
        %s507 = smul.u32 2, %s36
        %s508 = smul.u32 4, %s35
        %s509 = smul.u32 8, %s35
        %s510 = smul.u32 2, %s36
        %v512 = vld [vmem:[%s442] sm:$0xf]
        %v513 = vld [vmem:[%s442 + $0x4] sm:$0xf]
        %v514 = vld [vmem:[%s442 + $0x8] sm:$0xf]
        %v515 = vld [vmem:[%s442 + $0xc] sm:$0xf]
        %v516 = vld [vmem:[%s442 + $0x10] sm:$0xf]
        %v517 = vld [vmem:[%s442 + $0x14] sm:$0xf]
        %v518 = vld [vmem:[%s442 + $0x18] sm:$0xf]
        %v519 = vld [vmem:[%s442 + $0x1c] sm:$0xf]
        %v520 = vld [vmem:[%s442 + $0x20] sm:$0xf]
        %v521 = vld [vmem:[%s442 + $0x24] sm:$0xf]
        %v522 = vld [vmem:[%s442 + $0x28] sm:$0xf]
        %v523 = vld [vmem:[%s442 + $0x2c] sm:$0xf]
        %v524 = vld [vmem:[%s442 + $0x30] sm:$0xf]
        %v525 = vld [vmem:[%s442 + $0x34] sm:$0xf]
        %v526 = vld [vmem:[%s442 + $0x38] sm:$0xf]
        %v527 = vld [vmem:[%s442 + $0x3c] sm:$0xf]
        %v528 = vld [vmem:[%s442 + $0x40] sm:$0xf]
        %v529 = vld [vmem:[%s442 + $0x44] sm:$0xf]
        %v530 = vld [vmem:[%s442 + $0x48] sm:$0xf]
        %v531 = vld [vmem:[%s442 + $0x4c] sm:$0xf]
        %v532 = vld [vmem:[%s442 + $0x50] sm:$0xf]
        %v533 = vld [vmem:[%s442 + $0x54] sm:$0xf]
        %v534 = vld [vmem:[%s442 + $0x58] sm:$0xf]
        %v535 = vld [vmem:[%s442 + $0x5c] sm:$0xf]
        %v536 = vld [vmem:[%s442 + $0x60] sm:$0xf]
        %v537 = vld [vmem:[%s442 + $0x64] sm:$0xf]
        %v538 = vld [vmem:[%s442 + $0x68] sm:$0xf]
        %v539 = vld [vmem:[%s442 + $0x6c] sm:$0xf]
        %v540 = vld [vmem:[%s442 + $0x70] sm:$0xf]
        %v541 = vld [vmem:[%s442 + $0x74] sm:$0xf]
        %v542 = vld [vmem:[%s442 + $0x78] sm:$0xf]
        %v543 = vld [vmem:[%s442 + $0x7c] sm:$0xf]
        %v544 = vld [vmem:[%s442 + $0x80] sm:$0xf]
        %v545 = vld [vmem:[%s442 + $0x84] sm:$0xf]
        %v546 = vld [vmem:[%s442 + $0x88] sm:$0xf]
        %v547 = vld [vmem:[%s442 + $0x8c] sm:$0xf]
        %v548 = vld [vmem:[%s442 + $0x90] sm:$0xf]
        %v549 = vld [vmem:[%s442 + $0x94] sm:$0xf]
        %v550 = vld [vmem:[%s442 + $0x98] sm:$0xf]
        %v551 = vld [vmem:[%s442 + $0x9c] sm:$0xf]
        %v552 = vld [vmem:[%s442 + $0xa0] sm:$0xf]
        %v553 = vld [vmem:[%s442 + $0xa4] sm:$0xf]
        %v554 = vld [vmem:[%s442 + $0xa8] sm:$0xf]
        %v555 = vld [vmem:[%s442 + $0xac] sm:$0xf]
        %v556 = vld [vmem:[%s442 + $0xb0] sm:$0xf]
        %v557 = vld [vmem:[%s442 + $0xb4] sm:$0xf]
        %v558 = vld [vmem:[%s442 + $0xb8] sm:$0xf]
        %v559 = vld [vmem:[%s442 + $0xbc] sm:$0xf]
        %v560 = vld [vmem:[%s442 + $0xc0] sm:$0xf]
        %v561 = vld [vmem:[%s442 + $0xc4] sm:$0xf]
        %v562 = vld [vmem:[%s442 + $0xc8] sm:$0xf]
        %v563 = vld [vmem:[%s442 + $0xcc] sm:$0xf]
        %v564 = vld [vmem:[%s442 + $0xd0] sm:$0xf]
        %v565 = vld [vmem:[%s442 + $0xd4] sm:$0xf]
        %v566 = vld [vmem:[%s442 + $0xd8] sm:$0xf]
        %v567 = vld [vmem:[%s442 + $0xdc] sm:$0xf]
        %v568 = vld [vmem:[%s442 + $0xe0] sm:$0xf]
        %v569 = vld [vmem:[%s442 + $0xe4] sm:$0xf]
        %v570 = vld [vmem:[%s442 + $0xe8] sm:$0xf]
        %v571 = vld [vmem:[%s442 + $0xec] sm:$0xf]
        %v572 = vld [vmem:[%s442 + $0xf0] sm:$0xf]
        %v573 = vld [vmem:[%s442 + $0xf4] sm:$0xf]
        %v574 = vld [vmem:[%s442 + $0xf8] sm:$0xf]
        %v575 = vld [vmem:[%s442 + $0xfc] sm:$0xf]
        %v576 = vld [vmem:[#allocation8] sm:$0xf]
        %v577 = vld [vmem:[#allocation8 + $0x4] sm:$0xf]
        %v578 = vld [vmem:[#allocation8 + $0x8] sm:$0xf]
        %v579 = vld [vmem:[#allocation8 + $0xc] sm:$0xf]
        %v580 = vld [vmem:[#allocation8 + $0x10] sm:$0xf]
        %v581 = vld [vmem:[#allocation8 + $0x14] sm:$0xf]
        %v582 = vld [vmem:[#allocation8 + $0x18] sm:$0xf]
        %v583 = vld [vmem:[#allocation8 + $0x1c] sm:$0xf]
        %v584 = vld [vmem:[%s4] sm:$0x1]
        %v586 = vperm.slane %v584, 0
        %v652 = vunpack.c.l.b16 %v512
        %v653 = vunpack.c.l.b16 %v513
        %v654 = vunpack.c.l.b16 %v514
        %v655 = vunpack.c.l.b16 %v515
        %v656 = vunpack.c.l.b16 %v516
        %v657 = vunpack.c.l.b16 %v517
        %v658 = vunpack.c.l.b16 %v518
        %v659 = vunpack.c.l.b16 %v519
        %v660 = vunpack.c.l.b16 %v520
        %v661 = vunpack.c.l.b16 %v521
        %v662 = vunpack.c.l.b16 %v522
        %v663 = vunpack.c.l.b16 %v523
        %v664 = vunpack.c.l.b16 %v524
        %v665 = vunpack.c.l.b16 %v525
        %v666 = vunpack.c.l.b16 %v526
        %v667 = vunpack.c.l.b16 %v527
        %v668 = vunpack.c.l.b16 %v528
        %v669 = vunpack.c.l.b16 %v529
        %v670 = vunpack.c.l.b16 %v530
        %v671 = vunpack.c.l.b16 %v531
        %v672 = vunpack.c.l.b16 %v532
        %v673 = vunpack.c.l.b16 %v533
        %v674 = vunpack.c.l.b16 %v534
        %v675 = vunpack.c.l.b16 %v535
        %v676 = vunpack.c.l.b16 %v536
        %v677 = vunpack.c.l.b16 %v537
        %v678 = vunpack.c.l.b16 %v538
        %v679 = vunpack.c.l.b16 %v539
        %v680 = vunpack.c.l.b16 %v540
        %v681 = vunpack.c.l.b16 %v541
        %v682 = vunpack.c.l.b16 %v542
        %v683 = vunpack.c.l.b16 %v543
        %v684 = vunpack.c.l.b16 %v544
        %v685 = vunpack.c.l.b16 %v545
        %v686 = vunpack.c.l.b16 %v546
        %v687 = vunpack.c.l.b16 %v547
        %v688 = vunpack.c.l.b16 %v548
        %v689 = vunpack.c.l.b16 %v549
        %v690 = vunpack.c.l.b16 %v550
        %v691 = vunpack.c.l.b16 %v551
        %v692 = vunpack.c.l.b16 %v552
        %v693 = vunpack.c.l.b16 %v553
        %v694 = vunpack.c.l.b16 %v554
        %v695 = vunpack.c.l.b16 %v555
        %v696 = vunpack.c.l.b16 %v556
        %v697 = vunpack.c.l.b16 %v557
        %v698 = vunpack.c.l.b16 %v558
        %v699 = vunpack.c.l.b16 %v559
        %v700 = vunpack.c.l.b16 %v560
        %v701 = vunpack.c.l.b16 %v561
        %v702 = vunpack.c.l.b16 %v562
        %v703 = vunpack.c.l.b16 %v563
        %v704 = vunpack.c.l.b16 %v564
        %v705 = vunpack.c.l.b16 %v565
        %v706 = vunpack.c.l.b16 %v566
        %v707 = vunpack.c.l.b16 %v567
        %v708 = vunpack.c.l.b16 %v568
        %v709 = vunpack.c.l.b16 %v569
        %v710 = vunpack.c.l.b16 %v570
        %v711 = vunpack.c.l.b16 %v571
        %v712 = vunpack.c.l.b16 %v572
        %v713 = vunpack.c.l.b16 %v573
        %v714 = vunpack.c.l.b16 %v574
        %v715 = vunpack.c.l.b16 %v575
        %v716 = vpack.c.b16 %v653, %v652
        %v717 = vpack.c.b16 %v655, %v654
        %v718 = vpack.c.b16 %v657, %v656
        %v719 = vpack.c.b16 %v659, %v658
        %v720 = vpack.c.b16 %v661, %v660
        %v721 = vpack.c.b16 %v663, %v662
        %v722 = vpack.c.b16 %v665, %v664
        %v723 = vpack.c.b16 %v667, %v666
        %v724 = vpack.c.b16 %v669, %v668
        %v725 = vpack.c.b16 %v671, %v670
        %v726 = vpack.c.b16 %v673, %v672
        %v727 = vpack.c.b16 %v675, %v674
        %v728 = vpack.c.b16 %v677, %v676
        %v729 = vpack.c.b16 %v679, %v678
        %v730 = vpack.c.b16 %v681, %v680
        %v731 = vpack.c.b16 %v683, %v682
        %v732 = vpack.c.b16 %v685, %v684
        %v733 = vpack.c.b16 %v687, %v686
        %v734 = vpack.c.b16 %v689, %v688
        %v735 = vpack.c.b16 %v691, %v690
        %v736 = vpack.c.b16 %v693, %v692
        %v737 = vpack.c.b16 %v695, %v694
        %v738 = vpack.c.b16 %v697, %v696
        %v739 = vpack.c.b16 %v699, %v698
        %v740 = vpack.c.b16 %v701, %v700
        %v741 = vpack.c.b16 %v703, %v702
        %v742 = vpack.c.b16 %v705, %v704
        %v743 = vpack.c.b16 %v707, %v706
        %v744 = vpack.c.b16 %v709, %v708
        %v745 = vpack.c.b16 %v711, %v710
        %v746 = vpack.c.b16 %v713, %v712
        %v747 = vpack.c.b16 %v715, %v714
        %v756 = vunpack.c.l.b16 %v576
        %v757 = vunpack.c.l.b16 %v577
        %v758 = vunpack.c.l.b16 %v578
        %v759 = vunpack.c.l.b16 %v579
        %v760 = vunpack.c.l.b16 %v580
        %v761 = vunpack.c.l.b16 %v581
        %v762 = vunpack.c.l.b16 %v582
        %v763 = vunpack.c.l.b16 %v583
        %v764 = vpack.c.b16 %v757, %v756
        %v765 = vpack.c.b16 %v759, %v758
        %v766 = vpack.c.b16 %v761, %v760
        %v767 = vpack.c.b16 %v763, %v762
        %vm772 = vcmask 523264
        %v774 = vsel %vm772, %v716, 0
        %v777 = vsel %vm772, %v717, 0
        %v780 = vsel %vm772, %v718, 0
        %v783 = vsel %vm772, %v719, 0
        %v786 = vsel %vm772, %v720, 0
        %v789 = vsel %vm772, %v721, 0
        %v792 = vsel %vm772, %v722, 0
        %v795 = vsel %vm772, %v723, 0
        %v798 = vsel %vm772, %v724, 0
        %v801 = vsel %vm772, %v725, 0
        %v804 = vsel %vm772, %v726, 0
        %v807 = vsel %vm772, %v727, 0
        %v810 = vsel %vm772, %v728, 0
        %v813 = vsel %vm772, %v729, 0
        %v816 = vsel %vm772, %v730, 0
        %v819 = vsel %vm772, %v731, 0
        %v822 = vsel %vm772, %v732, 0
        %v825 = vsel %vm772, %v733, 0
        %v828 = vsel %vm772, %v734, 0
        %v831 = vsel %vm772, %v735, 0
        %v834 = vsel %vm772, %v736, 0
        %v837 = vsel %vm772, %v737, 0
        %v840 = vsel %vm772, %v738, 0
        %v843 = vsel %vm772, %v739, 0
        %v846 = vsel %vm772, %v740, 0
        %v849 = vsel %vm772, %v741, 0
        %v852 = vsel %vm772, %v742, 0
        %v855 = vsel %vm772, %v743, 0
        %v858 = vsel %vm772, %v744, 0
        %v861 = vsel %vm772, %v745, 0
        %v864 = vsel %vm772, %v746, 0
        %v867 = vsel %vm772, %v747, 0
        %869 = vmatpush.bf16.msra.mxu0 0
        %870 = vmatpush.bf16.msra.mxu0 0
        %871 = vmatpush.bf16.msra.mxu0 0
        %872 = vmatpush.bf16.msra.mxu0 0
        %873 = vmatpush.bf16.msra.mxu0 %v767
        %874 = vmatpush.bf16.msra.mxu0 %v766
        %875 = vmatpush.bf16.msra.mxu0 %v765
        %876 = vmatpush.bf16.msra.mxu0 %v764
        %877 = vmatmul.bf16.gmra.mxu0 %v774
        %v878 = vpop.f32.mrf.mxu0
        %v879 = vadd.f32 %v586, %v878
        %v880 = vpop.f32.mrf.mxu0
        %v881 = vadd.f32 %v586, %v880
        %882 = vmatmul.bf16.gmra.mxu0 %v777
        %v883 = vpop.f32.mrf.mxu0
        %v884 = vadd.f32 %v586, %v883
        %v885 = vpop.f32.mrf.mxu0
        %v886 = vadd.f32 %v586, %v885
        %887 = vmatmul.bf16.gmra.mxu0 %v780
        %v888 = vpop.f32.mrf.mxu0
        %v889 = vadd.f32 %v586, %v888
        %v890 = vpop.f32.mrf.mxu0
        %v891 = vadd.f32 %v586, %v890
        %892 = vmatmul.bf16.gmra.mxu0 %v783
        %v893 = vpop.f32.mrf.mxu0
        %v894 = vadd.f32 %v586, %v893
        %v895 = vpop.f32.mrf.mxu0
        %v896 = vadd.f32 %v586, %v895
        %897 = vmatmul.bf16.gmra.mxu0 %v786
        %v898 = vpop.f32.mrf.mxu0
        %v899 = vadd.f32 %v586, %v898
        %v900 = vpop.f32.mrf.mxu0
        %v901 = vadd.f32 %v586, %v900
        %902 = vmatmul.bf16.gmra.mxu0 %v789
        %v903 = vpop.f32.mrf.mxu0
        %v904 = vadd.f32 %v586, %v903
        %v905 = vpop.f32.mrf.mxu0
        %v906 = vadd.f32 %v586, %v905
        %907 = vmatmul.bf16.gmra.mxu0 %v792
        %v908 = vpop.f32.mrf.mxu0
        %v909 = vadd.f32 %v586, %v908
        %v910 = vpop.f32.mrf.mxu0
        %v911 = vadd.f32 %v586, %v910
        %912 = vmatmul.bf16.gmra.mxu0 %v795
        %v913 = vpop.f32.mrf.mxu0
        %v914 = vadd.f32 %v586, %v913
        %v915 = vpop.f32.mrf.mxu0
        %v916 = vadd.f32 %v586, %v915
        %917 = vmatmul.bf16.gmra.mxu0 %v798
        %v918 = vpop.f32.mrf.mxu0
        %v919 = vadd.f32 %v586, %v918
        %v920 = vpop.f32.mrf.mxu0
        %v921 = vadd.f32 %v586, %v920
        %922 = vmatmul.bf16.gmra.mxu0 %v801
        %v923 = vpop.f32.mrf.mxu0
        %v924 = vadd.f32 %v586, %v923
        %v925 = vpop.f32.mrf.mxu0
        %v926 = vadd.f32 %v586, %v925
        %927 = vmatmul.bf16.gmra.mxu0 %v804
        %v928 = vpop.f32.mrf.mxu0
        %v929 = vadd.f32 %v586, %v928
        %v930 = vpop.f32.mrf.mxu0
        %v931 = vadd.f32 %v586, %v930
        %932 = vmatmul.bf16.gmra.mxu0 %v807
        %v933 = vpop.f32.mrf.mxu0
        %v934 = vadd.f32 %v586, %v933
        %v935 = vpop.f32.mrf.mxu0
        %v936 = vadd.f32 %v586, %v935
        %937 = vmatmul.bf16.gmra.mxu0 %v810
        %v938 = vpop.f32.mrf.mxu0
        %v939 = vadd.f32 %v586, %v938
        %v940 = vpop.f32.mrf.mxu0
        %v941 = vadd.f32 %v586, %v940
        %942 = vmatmul.bf16.gmra.mxu0 %v813
        %v943 = vpop.f32.mrf.mxu0
        %v944 = vadd.f32 %v586, %v943
        %v945 = vpop.f32.mrf.mxu0
        %v946 = vadd.f32 %v586, %v945
        %947 = vmatmul.bf16.gmra.mxu0 %v816
        %v948 = vpop.f32.mrf.mxu0
        %v949 = vadd.f32 %v586, %v948
        %v950 = vpop.f32.mrf.mxu0
        %v951 = vadd.f32 %v586, %v950
        %952 = vmatmul.bf16.gmra.mxu0 %v819
        %v953 = vpop.f32.mrf.mxu0
        %v954 = vadd.f32 %v586, %v953
        %v955 = vpop.f32.mrf.mxu0
        %v956 = vadd.f32 %v586, %v955
        %957 = vmatmul.bf16.gmra.mxu0 %v822
        %v958 = vpop.f32.mrf.mxu0
        %v959 = vadd.f32 %v586, %v958
        %v960 = vpop.f32.mrf.mxu0
        %v961 = vadd.f32 %v586, %v960
        %962 = vmatmul.bf16.gmra.mxu0 %v825
        %v963 = vpop.f32.mrf.mxu0
        %v964 = vadd.f32 %v586, %v963
        %v965 = vpop.f32.mrf.mxu0
        %v966 = vadd.f32 %v586, %v965
        %967 = vmatmul.bf16.gmra.mxu0 %v828
        %v968 = vpop.f32.mrf.mxu0
        %v969 = vadd.f32 %v586, %v968
        %v970 = vpop.f32.mrf.mxu0
        %v971 = vadd.f32 %v586, %v970
        %972 = vmatmul.bf16.gmra.mxu0 %v831
        %v973 = vpop.f32.mrf.mxu0
        %v974 = vadd.f32 %v586, %v973
        %v975 = vpop.f32.mrf.mxu0
        %v976 = vadd.f32 %v586, %v975
        %977 = vmatmul.bf16.gmra.mxu0 %v834
        %v978 = vpop.f32.mrf.mxu0
        %v979 = vadd.f32 %v586, %v978
        %v980 = vpop.f32.mrf.mxu0
        %v981 = vadd.f32 %v586, %v980
        %982 = vmatmul.bf16.gmra.mxu0 %v837
        %v983 = vpop.f32.mrf.mxu0
        %v984 = vadd.f32 %v586, %v983
        %v985 = vpop.f32.mrf.mxu0
        %v986 = vadd.f32 %v586, %v985
        %987 = vmatmul.bf16.gmra.mxu0 %v840
        %v988 = vpop.f32.mrf.mxu0
        %v989 = vadd.f32 %v586, %v988
        %v990 = vpop.f32.mrf.mxu0
        %v991 = vadd.f32 %v586, %v990
        %992 = vmatmul.bf16.gmra.mxu0 %v843
        %v993 = vpop.f32.mrf.mxu0
        %v994 = vadd.f32 %v586, %v993
        %v995 = vpop.f32.mrf.mxu0
        %v996 = vadd.f32 %v586, %v995
        %997 = vmatmul.bf16.gmra.mxu0 %v846
        %v998 = vpop.f32.mrf.mxu0
        %v999 = vadd.f32 %v586, %v998
        %v1000 = vpop.f32.mrf.mxu0
        %v1001 = vadd.f32 %v586, %v1000
        %1002 = vmatmul.bf16.gmra.mxu0 %v849
        %v1003 = vpop.f32.mrf.mxu0
        %v1004 = vadd.f32 %v586, %v1003
        %v1005 = vpop.f32.mrf.mxu0
        %v1006 = vadd.f32 %v586, %v1005
        %1007 = vmatmul.bf16.gmra.mxu0 %v852
        %v1008 = vpop.f32.mrf.mxu0
        %v1009 = vadd.f32 %v586, %v1008
        %v1010 = vpop.f32.mrf.mxu0
        %v1011 = vadd.f32 %v586, %v1010
        %1012 = vmatmul.bf16.gmra.mxu0 %v855
        %v1013 = vpop.f32.mrf.mxu0
        %v1014 = vadd.f32 %v586, %v1013
        %v1015 = vpop.f32.mrf.mxu0
        %v1016 = vadd.f32 %v586, %v1015
        %1017 = vmatmul.bf16.gmra.mxu0 %v858
        %v1018 = vpop.f32.mrf.mxu0
        %v1019 = vadd.f32 %v586, %v1018
        %v1020 = vpop.f32.mrf.mxu0
        %v1021 = vadd.f32 %v586, %v1020
        %1022 = vmatmul.bf16.gmra.mxu0 %v861
        %v1023 = vpop.f32.mrf.mxu0
        %v1024 = vadd.f32 %v586, %v1023
        %v1025 = vpop.f32.mrf.mxu0
        %v1026 = vadd.f32 %v586, %v1025
        %1027 = vmatmul.bf16.gmra.mxu0 %v864
        %v1028 = vpop.f32.mrf.mxu0
        %v1029 = vadd.f32 %v586, %v1028
        %v1030 = vpop.f32.mrf.mxu0
        %v1031 = vadd.f32 %v586, %v1030
        %1032 = vmatmul.bf16.gmra.mxu0 %v867
        %v1033 = vpop.f32.mrf.mxu0
        %v1034 = vadd.f32 %v586, %v1033
        %v1035 = vpop.f32.mrf.mxu0
        %v1036 = vadd.f32 %v586, %v1035
        %1037 = vdwg.mxu0
        %v1038 = vadd.f32 %v879, 3.0
        %v1039 = vadd.f32 %v881, 3.0
        %v1040 = vadd.f32 %v884, 3.0
        %v1041 = vadd.f32 %v886, 3.0
        %v1042 = vadd.f32 %v889, 3.0
        %v1043 = vadd.f32 %v891, 3.0
        %v1044 = vadd.f32 %v894, 3.0
        %v1045 = vadd.f32 %v896, 3.0
        %v1046 = vadd.f32 %v899, 3.0
        %v1047 = vadd.f32 %v901, 3.0
        %v1048 = vadd.f32 %v904, 3.0
        %v1049 = vadd.f32 %v906, 3.0
        %v1050 = vadd.f32 %v909, 3.0
        %v1051 = vadd.f32 %v911, 3.0
        %v1052 = vadd.f32 %v914, 3.0
        %v1053 = vadd.f32 %v916, 3.0
        %v1054 = vadd.f32 %v919, 3.0
        %v1055 = vadd.f32 %v921, 3.0
        %v1056 = vadd.f32 %v924, 3.0
        %v1057 = vadd.f32 %v926, 3.0
        %v1058 = vadd.f32 %v929, 3.0
        %v1059 = vadd.f32 %v931, 3.0
        %v1060 = vadd.f32 %v934, 3.0
        %v1061 = vadd.f32 %v936, 3.0
        %v1062 = vadd.f32 %v939, 3.0
        %v1063 = vadd.f32 %v941, 3.0
        %v1064 = vadd.f32 %v944, 3.0
        %v1065 = vadd.f32 %v946, 3.0
        %v1066 = vadd.f32 %v949, 3.0
        %v1067 = vadd.f32 %v951, 3.0
        %v1068 = vadd.f32 %v954, 3.0
        %v1069 = vadd.f32 %v956, 3.0
        %v1070 = vadd.f32 %v959, 3.0
        %v1071 = vadd.f32 %v961, 3.0
        %v1072 = vadd.f32 %v964, 3.0
        %v1073 = vadd.f32 %v966, 3.0
        %v1074 = vadd.f32 %v969, 3.0
        %v1075 = vadd.f32 %v971, 3.0
        %v1076 = vadd.f32 %v974, 3.0
        %v1077 = vadd.f32 %v976, 3.0
        %v1078 = vadd.f32 %v979, 3.0
        %v1079 = vadd.f32 %v981, 3.0
        %v1080 = vadd.f32 %v984, 3.0
        %v1081 = vadd.f32 %v986, 3.0
        %v1082 = vadd.f32 %v989, 3.0
        %v1083 = vadd.f32 %v991, 3.0
        %v1084 = vadd.f32 %v994, 3.0
        %v1085 = vadd.f32 %v996, 3.0
        %v1086 = vadd.f32 %v999, 3.0
        %v1087 = vadd.f32 %v1001, 3.0
        %v1088 = vadd.f32 %v1004, 3.0
        %v1089 = vadd.f32 %v1006, 3.0
        %v1090 = vadd.f32 %v1009, 3.0
        %v1091 = vadd.f32 %v1011, 3.0
        %v1092 = vadd.f32 %v1014, 3.0
        %v1093 = vadd.f32 %v1016, 3.0
        %v1094 = vadd.f32 %v1019, 3.0
        %v1095 = vadd.f32 %v1021, 3.0
        %v1096 = vadd.f32 %v1024, 3.0
        %v1097 = vadd.f32 %v1026, 3.0
        %v1098 = vadd.f32 %v1029, 3.0
        %v1099 = vadd.f32 %v1031, 3.0
        %v1100 = vadd.f32 %v1034, 3.0
        %v1101 = vadd.f32 %v1036, 3.0
        %v1102 = vmax.f32 %v1038, 0.0
        %v1103 = vmax.f32 %v1039, 0.0
        %v1104 = vmax.f32 %v1040, 0.0
        %v1105 = vmax.f32 %v1041, 0.0
        %v1106 = vmax.f32 %v1042, 0.0
        %v1107 = vmax.f32 %v1043, 0.0
        %v1108 = vmax.f32 %v1044, 0.0
        %v1109 = vmax.f32 %v1045, 0.0
        %v1110 = vmax.f32 %v1046, 0.0
        %v1111 = vmax.f32 %v1047, 0.0
        %v1112 = vmax.f32 %v1048, 0.0
        %v1113 = vmax.f32 %v1049, 0.0
        %v1114 = vmax.f32 %v1050, 0.0
        %v1115 = vmax.f32 %v1051, 0.0
        %v1116 = vmax.f32 %v1052, 0.0
        %v1117 = vmax.f32 %v1053, 0.0
        %v1118 = vmax.f32 %v1054, 0.0
        %v1119 = vmax.f32 %v1055, 0.0
        %v1120 = vmax.f32 %v1056, 0.0
        %v1121 = vmax.f32 %v1057, 0.0
        %v1122 = vmax.f32 %v1058, 0.0
        %v1123 = vmax.f32 %v1059, 0.0
        %v1124 = vmax.f32 %v1060, 0.0
        %v1125 = vmax.f32 %v1061, 0.0
        %v1126 = vmax.f32 %v1062, 0.0
        %v1127 = vmax.f32 %v1063, 0.0
        %v1128 = vmax.f32 %v1064, 0.0
        %v1129 = vmax.f32 %v1065, 0.0
        %v1130 = vmax.f32 %v1066, 0.0
        %v1131 = vmax.f32 %v1067, 0.0
        %v1132 = vmax.f32 %v1068, 0.0
        %v1133 = vmax.f32 %v1069, 0.0
        %v1134 = vmax.f32 %v1070, 0.0
        %v1135 = vmax.f32 %v1071, 0.0
        %v1136 = vmax.f32 %v1072, 0.0
        %v1137 = vmax.f32 %v1073, 0.0
        %v1138 = vmax.f32 %v1074, 0.0
        %v1139 = vmax.f32 %v1075, 0.0
        %v1140 = vmax.f32 %v1076, 0.0
        %v1141 = vmax.f32 %v1077, 0.0
        %v1142 = vmax.f32 %v1078, 0.0
        %v1143 = vmax.f32 %v1079, 0.0
        %v1144 = vmax.f32 %v1080, 0.0
        %v1145 = vmax.f32 %v1081, 0.0
        %v1146 = vmax.f32 %v1082, 0.0
        %v1147 = vmax.f32 %v1083, 0.0
        %v1148 = vmax.f32 %v1084, 0.0
        %v1149 = vmax.f32 %v1085, 0.0
        %v1150 = vmax.f32 %v1086, 0.0
        %v1151 = vmax.f32 %v1087, 0.0
        %v1152 = vmax.f32 %v1088, 0.0
        %v1153 = vmax.f32 %v1089, 0.0
        %v1154 = vmax.f32 %v1090, 0.0
        %v1155 = vmax.f32 %v1091, 0.0
        %v1156 = vmax.f32 %v1092, 0.0
        %v1157 = vmax.f32 %v1093, 0.0
        %v1158 = vmax.f32 %v1094, 0.0
        %v1159 = vmax.f32 %v1095, 0.0
        %v1160 = vmax.f32 %v1096, 0.0
        %v1161 = vmax.f32 %v1097, 0.0
        %v1162 = vmax.f32 %v1098, 0.0
        %v1163 = vmax.f32 %v1099, 0.0
        %v1164 = vmax.f32 %v1100, 0.0
        %v1165 = vmax.f32 %v1101, 0.0
        %v1166 = vmin.f32 %v1102, 6.0
        %v1167 = vmin.f32 %v1103, 6.0
        %v1168 = vmin.f32 %v1104, 6.0
        %v1169 = vmin.f32 %v1105, 6.0
        %v1170 = vmin.f32 %v1106, 6.0
        %v1171 = vmin.f32 %v1107, 6.0
        %v1172 = vmin.f32 %v1108, 6.0
        %v1173 = vmin.f32 %v1109, 6.0
        %v1174 = vmin.f32 %v1110, 6.0
        %v1175 = vmin.f32 %v1111, 6.0
        %v1176 = vmin.f32 %v1112, 6.0
        %v1177 = vmin.f32 %v1113, 6.0
        %v1178 = vmin.f32 %v1114, 6.0
        %v1179 = vmin.f32 %v1115, 6.0
        %v1180 = vmin.f32 %v1116, 6.0
        %v1181 = vmin.f32 %v1117, 6.0
        %v1182 = vmin.f32 %v1118, 6.0
        %v1183 = vmin.f32 %v1119, 6.0
        %v1184 = vmin.f32 %v1120, 6.0
        %v1185 = vmin.f32 %v1121, 6.0
        %v1186 = vmin.f32 %v1122, 6.0
        %v1187 = vmin.f32 %v1123, 6.0
        %v1188 = vmin.f32 %v1124, 6.0
        %v1189 = vmin.f32 %v1125, 6.0
        %v1190 = vmin.f32 %v1126, 6.0
        %v1191 = vmin.f32 %v1127, 6.0
        %v1192 = vmin.f32 %v1128, 6.0
        %v1193 = vmin.f32 %v1129, 6.0
        %v1194 = vmin.f32 %v1130, 6.0
        %v1195 = vmin.f32 %v1131, 6.0
        %v1196 = vmin.f32 %v1132, 6.0
        %v1197 = vmin.f32 %v1133, 6.0
        %v1198 = vmin.f32 %v1134, 6.0
        %v1199 = vmin.f32 %v1135, 6.0
        %v1200 = vmin.f32 %v1136, 6.0
        %v1201 = vmin.f32 %v1137, 6.0
        %v1202 = vmin.f32 %v1138, 6.0
        %v1203 = vmin.f32 %v1139, 6.0
        %v1204 = vmin.f32 %v1140, 6.0
        %v1205 = vmin.f32 %v1141, 6.0
        %v1206 = vmin.f32 %v1142, 6.0
        %v1207 = vmin.f32 %v1143, 6.0
        %v1208 = vmin.f32 %v1144, 6.0
        %v1209 = vmin.f32 %v1145, 6.0
        %v1210 = vmin.f32 %v1146, 6.0
        %v1211 = vmin.f32 %v1147, 6.0
        %v1212 = vmin.f32 %v1148, 6.0
        %v1213 = vmin.f32 %v1149, 6.0
        %v1214 = vmin.f32 %v1150, 6.0
        %v1215 = vmin.f32 %v1151, 6.0
        %v1216 = vmin.f32 %v1152, 6.0
        %v1217 = vmin.f32 %v1153, 6.0
        %v1218 = vmin.f32 %v1154, 6.0
        %v1219 = vmin.f32 %v1155, 6.0
        %v1220 = vmin.f32 %v1156, 6.0
        %v1221 = vmin.f32 %v1157, 6.0
        %v1222 = vmin.f32 %v1158, 6.0
        %v1223 = vmin.f32 %v1159, 6.0
        %v1224 = vmin.f32 %v1160, 6.0
        %v1225 = vmin.f32 %v1161, 6.0
        %v1226 = vmin.f32 %v1162, 6.0
        %v1227 = vmin.f32 %v1163, 6.0
        %v1228 = vmin.f32 %v1164, 6.0
        %v1229 = vmin.f32 %v1165, 6.0
        %v1230 = vmul.f32 %v879, %v1166
        %v1231 = vmul.f32 %v881, %v1167
        %v1232 = vmul.f32 %v884, %v1168
        %v1233 = vmul.f32 %v886, %v1169
        %v1234 = vmul.f32 %v889, %v1170
        %v1235 = vmul.f32 %v891, %v1171
        %v1236 = vmul.f32 %v894, %v1172
        %v1237 = vmul.f32 %v896, %v1173
        %v1238 = vmul.f32 %v899, %v1174
        %v1239 = vmul.f32 %v901, %v1175
        %v1240 = vmul.f32 %v904, %v1176
        %v1241 = vmul.f32 %v906, %v1177
        %v1242 = vmul.f32 %v909, %v1178
        %v1243 = vmul.f32 %v911, %v1179
        %v1244 = vmul.f32 %v914, %v1180
        %v1245 = vmul.f32 %v916, %v1181
        %v1246 = vmul.f32 %v919, %v1182
        %v1247 = vmul.f32 %v921, %v1183
        %v1248 = vmul.f32 %v924, %v1184
        %v1249 = vmul.f32 %v926, %v1185
        %v1250 = vmul.f32 %v929, %v1186
        %v1251 = vmul.f32 %v931, %v1187
        %v1252 = vmul.f32 %v934, %v1188
        %v1253 = vmul.f32 %v936, %v1189
        %v1254 = vmul.f32 %v939, %v1190
        %v1255 = vmul.f32 %v941, %v1191
        %v1256 = vmul.f32 %v944, %v1192
        %v1257 = vmul.f32 %v946, %v1193
        %v1258 = vmul.f32 %v949, %v1194
        %v1259 = vmul.f32 %v951, %v1195
        %v1260 = vmul.f32 %v954, %v1196
        %v1261 = vmul.f32 %v956, %v1197
        %v1262 = vmul.f32 %v959, %v1198
        %v1263 = vmul.f32 %v961, %v1199
        %v1264 = vmul.f32 %v964, %v1200
        %v1265 = vmul.f32 %v966, %v1201
        %v1266 = vmul.f32 %v969, %v1202
        %v1267 = vmul.f32 %v971, %v1203
        %v1268 = vmul.f32 %v974, %v1204
        %v1269 = vmul.f32 %v976, %v1205
        %v1270 = vmul.f32 %v979, %v1206
        %v1271 = vmul.f32 %v981, %v1207
        %v1272 = vmul.f32 %v984, %v1208
        %v1273 = vmul.f32 %v986, %v1209
        %v1274 = vmul.f32 %v989, %v1210
        %v1275 = vmul.f32 %v991, %v1211
        %v1276 = vmul.f32 %v994, %v1212
        %v1277 = vmul.f32 %v996, %v1213
        %v1278 = vmul.f32 %v999, %v1214
        %v1279 = vmul.f32 %v1001, %v1215
        %v1280 = vmul.f32 %v1004, %v1216
        %v1281 = vmul.f32 %v1006, %v1217
        %v1282 = vmul.f32 %v1009, %v1218
        %v1283 = vmul.f32 %v1011, %v1219
        %v1284 = vmul.f32 %v1014, %v1220
        %v1285 = vmul.f32 %v1016, %v1221
        %v1286 = vmul.f32 %v1019, %v1222
        %v1287 = vmul.f32 %v1021, %v1223
        %v1288 = vmul.f32 %v1024, %v1224
        %v1289 = vmul.f32 %v1026, %v1225
        %v1290 = vmul.f32 %v1029, %v1226
        %v1291 = vmul.f32 %v1031, %v1227
        %v1292 = vmul.f32 %v1034, %v1228
        %v1293 = vmul.f32 %v1036, %v1229
        %v1294 = vmul.f32 %v1230, 0.16666667
        %v1295 = vmul.f32 %v1231, 0.16666667
        %v1296 = vmul.f32 %v1232, 0.16666667
        %v1297 = vmul.f32 %v1233, 0.16666667
        %v1298 = vmul.f32 %v1234, 0.16666667
        %v1299 = vmul.f32 %v1235, 0.16666667
        %v1300 = vmul.f32 %v1236, 0.16666667
        %v1301 = vmul.f32 %v1237, 0.16666667
        %v1302 = vmul.f32 %v1238, 0.16666667
        %v1303 = vmul.f32 %v1239, 0.16666667
        %v1304 = vmul.f32 %v1240, 0.16666667
        %v1305 = vmul.f32 %v1241, 0.16666667
        %v1306 = vmul.f32 %v1242, 0.16666667
        %v1307 = vmul.f32 %v1243, 0.16666667
        %v1308 = vmul.f32 %v1244, 0.16666667
        %v1309 = vmul.f32 %v1245, 0.16666667
        %v1310 = vmul.f32 %v1246, 0.16666667
        %v1311 = vmul.f32 %v1247, 0.16666667
        %v1312 = vmul.f32 %v1248, 0.16666667
        %v1313 = vmul.f32 %v1249, 0.16666667
        %v1314 = vmul.f32 %v1250, 0.16666667
        %v1315 = vmul.f32 %v1251, 0.16666667
        %v1316 = vmul.f32 %v1252, 0.16666667
        %v1317 = vmul.f32 %v1253, 0.16666667
        %v1318 = vmul.f32 %v1254, 0.16666667
        %v1319 = vmul.f32 %v1255, 0.16666667
        %v1320 = vmul.f32 %v1256, 0.16666667
        %v1321 = vmul.f32 %v1257, 0.16666667
        %v1322 = vmul.f32 %v1258, 0.16666667
        %v1323 = vmul.f32 %v1259, 0.16666667
        %v1324 = vmul.f32 %v1260, 0.16666667
        %v1325 = vmul.f32 %v1261, 0.16666667
        %v1326 = vmul.f32 %v1262, 0.16666667
        %v1327 = vmul.f32 %v1263, 0.16666667
        %v1328 = vmul.f32 %v1264, 0.16666667
        %v1329 = vmul.f32 %v1265, 0.16666667
        %v1330 = vmul.f32 %v1266, 0.16666667
        %v1331 = vmul.f32 %v1267, 0.16666667
        %v1332 = vmul.f32 %v1268, 0.16666667
        %v1333 = vmul.f32 %v1269, 0.16666667
        %v1334 = vmul.f32 %v1270, 0.16666667
        %v1335 = vmul.f32 %v1271, 0.16666667
        %v1336 = vmul.f32 %v1272, 0.16666667
        %v1337 = vmul.f32 %v1273, 0.16666667
        %v1338 = vmul.f32 %v1274, 0.16666667
        %v1339 = vmul.f32 %v1275, 0.16666667
        %v1340 = vmul.f32 %v1276, 0.16666667
        %v1341 = vmul.f32 %v1277, 0.16666667
        %v1342 = vmul.f32 %v1278, 0.16666667
        %v1343 = vmul.f32 %v1279, 0.16666667
        %v1344 = vmul.f32 %v1280, 0.16666667
        %v1345 = vmul.f32 %v1281, 0.16666667
        %v1346 = vmul.f32 %v1282, 0.16666667
        %v1347 = vmul.f32 %v1283, 0.16666667
        %v1348 = vmul.f32 %v1284, 0.16666667
        %v1349 = vmul.f32 %v1285, 0.16666667
        %v1350 = vmul.f32 %v1286, 0.16666667
        %v1351 = vmul.f32 %v1287, 0.16666667
        %v1352 = vmul.f32 %v1288, 0.16666667
        %v1353 = vmul.f32 %v1289, 0.16666667
        %v1354 = vmul.f32 %v1290, 0.16666667
        %v1355 = vmul.f32 %v1291, 0.16666667
        %v1356 = vmul.f32 %v1292, 0.16666667
        %v1357 = vmul.f32 %v1293, 0.16666667
        %1358 = vst [vmem:[#allocation2] sm:$0xff] %v1294
        %1359 = vst [vmem:[#allocation2 + $0x8] sm:$0xff] %v1295
        %1360 = vst [vmem:[#allocation2 + $0x10] sm:$0xff] %v1296
        %1361 = vst [vmem:[#allocation2 + $0x18] sm:$0xff] %v1297
        %1362 = vst [vmem:[#allocation2 + $0x20] sm:$0xff] %v1298
        %1363 = vst [vmem:[#allocation2 + $0x28] sm:$0xff] %v1299
        %1364 = vst [vmem:[#allocation2 + $0x30] sm:$0xff] %v1300
        %1365 = vst [vmem:[#allocation2 + $0x38] sm:$0xff] %v1301
        %1366 = vst [vmem:[#allocation2 + $0x40] sm:$0xff] %v1302
        %1367 = vst [vmem:[#allocation2 + $0x48] sm:$0xff] %v1303
        %1368 = vst [vmem:[#allocation2 + $0x50] sm:$0xff] %v1304
        %1369 = vst [vmem:[#allocation2 + $0x58] sm:$0xff] %v1305
        %1370 = vst [vmem:[#allocation2 + $0x60] sm:$0xff] %v1306
        %1371 = vst [vmem:[#allocation2 + $0x68] sm:$0xff] %v1307
        %1372 = vst [vmem:[#allocation2 + $0x70] sm:$0xff] %v1308
        %1373 = vst [vmem:[#allocation2 + $0x78] sm:$0xff] %v1309
        %1374 = vst [vmem:[#allocation2 + $0x80] sm:$0xff] %v1310
        %1375 = vst [vmem:[#allocation2 + $0x88] sm:$0xff] %v1311
        %1376 = vst [vmem:[#allocation2 + $0x90] sm:$0xff] %v1312
        %1377 = vst [vmem:[#allocation2 + $0x98] sm:$0xff] %v1313
        %1378 = vst [vmem:[#allocation2 + $0xa0] sm:$0xff] %v1314
        %1379 = vst [vmem:[#allocation2 + $0xa8] sm:$0xff] %v1315
        %1380 = vst [vmem:[#allocation2 + $0xb0] sm:$0xff] %v1316
        %1381 = vst [vmem:[#allocation2 + $0xb8] sm:$0xff] %v1317
        %1382 = vst [vmem:[#allocation2 + $0xc0] sm:$0xff] %v1318
        %1383 = vst [vmem:[#allocation2 + $0xc8] sm:$0xff] %v1319
        %1384 = vst [vmem:[#allocation2 + $0xd0] sm:$0xff] %v1320
        %1385 = vst [vmem:[#allocation2 + $0xd8] sm:$0xff] %v1321
        %1386 = vst [vmem:[#allocation2 + $0xe0] sm:$0xff] %v1322
        %1387 = vst [vmem:[#allocation2 + $0xe8] sm:$0xff] %v1323
        %1388 = vst [vmem:[#allocation2 + $0xf0] sm:$0xff] %v1324
        %1389 = vst [vmem:[#allocation2 + $0xf8] sm:$0xff] %v1325
        %1390 = vst [vmem:[#allocation2 + $0x100] sm:$0xff] %v1326
        %1391 = vst [vmem:[#allocation2 + $0x108] sm:$0xff] %v1327
        %1392 = vst [vmem:[#allocation2 + $0x110] sm:$0xff] %v1328
        %1393 = vst [vmem:[#allocation2 + $0x118] sm:$0xff] %v1329
        %1394 = vst [vmem:[#allocation2 + $0x120] sm:$0xff] %v1330
        %1395 = vst [vmem:[#allocation2 + $0x128] sm:$0xff] %v1331
        %1396 = vst [vmem:[#allocation2 + $0x130] sm:$0xff] %v1332
        %1397 = vst [vmem:[#allocation2 + $0x138] sm:$0xff] %v1333
        %1398 = vst [vmem:[#allocation2 + $0x140] sm:$0xff] %v1334
        %1399 = vst [vmem:[#allocation2 + $0x148] sm:$0xff] %v1335
        %1400 = vst [vmem:[#allocation2 + $0x150] sm:$0xff] %v1336
        %1401 = vst [vmem:[#allocation2 + $0x158] sm:$0xff] %v1337
        %1402 = vst [vmem:[#allocation2 + $0x160] sm:$0xff] %v1338
        %1403 = vst [vmem:[#allocation2 + $0x168] sm:$0xff] %v1339
        %1404 = vst [vmem:[#allocation2 + $0x170] sm:$0xff] %v1340
        %1405 = vst [vmem:[#allocation2 + $0x178] sm:$0xff] %v1341
        %1406 = vst [vmem:[#allocation2 + $0x180] sm:$0xff] %v1342
        %1407 = vst [vmem:[#allocation2 + $0x188] sm:$0xff] %v1343
        %1408 = vst [vmem:[#allocation2 + $0x190] sm:$0xff] %v1344
        %1409 = vst [vmem:[#allocation2 + $0x198] sm:$0xff] %v1345
        %1410 = vst [vmem:[#allocation2 + $0x1a0] sm:$0xff] %v1346
        %1411 = vst [vmem:[#allocation2 + $0x1a8] sm:$0xff] %v1347
        %1412 = vst [vmem:[#allocation2 + $0x1b0] sm:$0xff] %v1348
        %1413 = vst [vmem:[#allocation2 + $0x1b8] sm:$0xff] %v1349
        %1414 = vst [vmem:[#allocation2 + $0x1c0] sm:$0xff] %v1350
        %1415 = vst [vmem:[#allocation2 + $0x1c8] sm:$0xff] %v1351
        %1416 = vst [vmem:[#allocation2 + $0x1d0] sm:$0xff] %v1352
        %1417 = vst [vmem:[#allocation2 + $0x1d8] sm:$0xff] %v1353
        %1418 = vst [vmem:[#allocation2 + $0x1e0] sm:$0xff] %v1354
        %1419 = vst [vmem:[#allocation2 + $0x1e8] sm:$0xff] %v1355
        %1420 = vst [vmem:[#allocation2 + $0x1f0] sm:$0xff] %v1356
        %1421 = vst [vmem:[#allocation2 + $0x1f8] sm:$0xff] %v1357
        %v1422 = vld [vmem:[%s452] sm:$0xf]
        %v1423 = vld [vmem:[%s452 + $0x4] sm:$0xf]
        %v1424 = vld [vmem:[%s452 + $0x8] sm:$0xf]
        %v1425 = vld [vmem:[%s452 + $0xc] sm:$0xf]
        %v1426 = vld [vmem:[%s452 + $0x10] sm:$0xf]
        %v1427 = vld [vmem:[%s452 + $0x14] sm:$0xf]
        %v1428 = vld [vmem:[%s452 + $0x18] sm:$0xf]
        %v1429 = vld [vmem:[%s452 + $0x1c] sm:$0xf]
        %v1430 = vld [vmem:[#allocation9] sm:$0xf]
        %v1431 = vld [vmem:[#allocation9 + $0x4] sm:$0xf]
        %v1432 = vld [vmem:[#allocation9 + $0x8] sm:$0xf]
        %v1433 = vld [vmem:[#allocation9 + $0xc] sm:$0xf]
        %v1434 = vld [vmem:[#allocation9 + $0x10] sm:$0xf]
        %v1435 = vld [vmem:[#allocation9 + $0x14] sm:$0xf]
        %v1436 = vld [vmem:[#allocation9 + $0x18] sm:$0xf]
        %v1437 = vld [vmem:[#allocation9 + $0x1c] sm:$0xf]
        %v1438 = vld [vmem:[#allocation9 + $0x20] sm:$0xf]
        %v1439 = vld [vmem:[#allocation9 + $0x24] sm:$0xf]
        %v1440 = vld [vmem:[#allocation9 + $0x28] sm:$0xf]
        %v1441 = vld [vmem:[#allocation9 + $0x2c] sm:$0xf]
        %v1442 = vld [vmem:[#allocation9 + $0x30] sm:$0xf]
        %v1443 = vld [vmem:[#allocation9 + $0x34] sm:$0xf]
        %v1444 = vld [vmem:[#allocation9 + $0x38] sm:$0xf]
        %v1445 = vld [vmem:[#allocation9 + $0x3c] sm:$0xf]
        %v1446 = vld [vmem:[%s5] sm:$0x1]
        %v1448 = vperm.slane %v1446, 0
        %v1458 = vunpack.c.l.b16 %v1422
        %v1459 = vunpack.c.l.b16 %v1423
        %v1460 = vunpack.c.l.b16 %v1424
        %v1461 = vunpack.c.l.b16 %v1425
        %v1462 = vunpack.c.l.b16 %v1426
        %v1463 = vunpack.c.l.b16 %v1427
        %v1464 = vunpack.c.l.b16 %v1428
        %v1465 = vunpack.c.l.b16 %v1429
        %v1466 = vpack.c.b16 %v1459, %v1458
        %v1467 = vpack.c.b16 %v1461, %v1460
        %v1468 = vpack.c.b16 %v1463, %v1462
        %v1469 = vpack.c.b16 %v1465, %v1464
        %v1490 = vunpack.c.l.b16 %v1430
        %v1491 = vunpack.c.l.b16 %v1431
        %v1492 = vunpack.c.l.b16 %v1432
        %v1493 = vunpack.c.l.b16 %v1433
        %v1494 = vunpack.c.l.b16 %v1434
        %v1495 = vunpack.c.l.b16 %v1435
        %v1496 = vunpack.c.l.b16 %v1436
        %v1497 = vunpack.c.l.b16 %v1437
        %v1498 = vunpack.c.l.b16 %v1438
        %v1499 = vunpack.c.l.b16 %v1439
        %v1500 = vunpack.c.l.b16 %v1440
        %v1501 = vunpack.c.l.b16 %v1441
        %v1502 = vunpack.c.l.b16 %v1442
        %v1503 = vunpack.c.l.b16 %v1443
        %v1504 = vunpack.c.l.b16 %v1444
        %v1505 = vunpack.c.l.b16 %v1445
        %v1506 = vpack.c.b16 %v1491, %v1490
        %v1507 = vpack.c.b16 %v1493, %v1492
        %v1508 = vpack.c.b16 %v1495, %v1494
        %v1509 = vpack.c.b16 %v1497, %v1496
        %v1510 = vpack.c.b16 %v1499, %v1498
        %v1511 = vpack.c.b16 %v1501, %v1500
        %v1512 = vpack.c.b16 %v1503, %v1502
        %v1513 = vpack.c.b16 %v1505, %v1504
        %1522 = vmatpush.bf16.msra.mxu0 %v1513
        %1523 = vmatpush.bf16.msra.mxu0 %v1512
        %1524 = vmatpush.bf16.msra.mxu0 %v1511
        %1525 = vmatpush.bf16.msra.mxu0 %v1510
        %1526 = vmatpush.bf16.msra.mxu0 %v1509
        %1527 = vmatpush.bf16.msra.mxu0 %v1508
        %1528 = vmatpush.bf16.msra.mxu0 %v1507
        %1529 = vmatpush.bf16.msra.mxu0 %v1506
        %1530 = vmatmul.bf16.gmra.mxu0 %v1466
        %v1531 = vpop.f32.mrf.mxu0
        %v1532 = vadd.f32 %v1448, %v1531
        %v1533 = vpop.f32.mrf.mxu0
        %v1534 = vadd.f32 %v1448, %v1533
        %1535 = vmatmul.bf16.gmra.mxu0 %v1467
        %v1536 = vpop.f32.mrf.mxu0
        %v1537 = vadd.f32 %v1448, %v1536
        %v1538 = vpop.f32.mrf.mxu0
        %v1539 = vadd.f32 %v1448, %v1538
        %1540 = vmatmul.bf16.gmra.mxu0 %v1468
        %v1541 = vpop.f32.mrf.mxu0
        %v1542 = vadd.f32 %v1448, %v1541
        %v1543 = vpop.f32.mrf.mxu0
        %v1544 = vadd.f32 %v1448, %v1543
        %1545 = vmatmul.bf16.gmra.mxu0 %v1469
        %v1546 = vpop.f32.mrf.mxu0
        %v1547 = vadd.f32 %v1448, %v1546
        %v1548 = vpop.f32.mrf.mxu0
        %v1549 = vadd.f32 %v1448, %v1548
        %1550 = vdwg.mxu0
        %v1551 = vadd.f32 %v1532, 3.0
        %v1552 = vadd.f32 %v1534, 3.0
        %v1553 = vadd.f32 %v1537, 3.0
        %v1554 = vadd.f32 %v1539, 3.0
        %v1555 = vadd.f32 %v1542, 3.0
        %v1556 = vadd.f32 %v1544, 3.0
        %v1557 = vadd.f32 %v1547, 3.0
        %v1558 = vadd.f32 %v1549, 3.0
        %v1559 = vmax.f32 %v1551, 0.0
        %v1560 = vmax.f32 %v1552, 0.0
        %v1561 = vmax.f32 %v1553, 0.0
        %v1562 = vmax.f32 %v1554, 0.0
        %v1563 = vmax.f32 %v1555, 0.0
        %v1564 = vmax.f32 %v1556, 0.0
        %v1565 = vmax.f32 %v1557, 0.0
        %v1566 = vmax.f32 %v1558, 0.0
        %v1567 = vmin.f32 %v1559, 6.0
        %v1568 = vmin.f32 %v1560, 6.0
        %v1569 = vmin.f32 %v1561, 6.0
        %v1570 = vmin.f32 %v1562, 6.0
        %v1571 = vmin.f32 %v1563, 6.0
        %v1572 = vmin.f32 %v1564, 6.0
        %v1573 = vmin.f32 %v1565, 6.0
        %v1574 = vmin.f32 %v1566, 6.0
        %v1575 = vmul.f32 %v1532, %v1567
        %v1576 = vmul.f32 %v1534, %v1568
        %v1577 = vmul.f32 %v1537, %v1569
        %v1578 = vmul.f32 %v1539, %v1570
        %v1579 = vmul.f32 %v1542, %v1571
        %v1580 = vmul.f32 %v1544, %v1572
        %v1581 = vmul.f32 %v1547, %v1573
        %v1582 = vmul.f32 %v1549, %v1574
        %v1583 = vmul.f32 %v1575, 0.16666667
        %v1584 = vmul.f32 %v1576, 0.16666667
        %v1585 = vmul.f32 %v1577, 0.16666667
        %v1586 = vmul.f32 %v1578, 0.16666667
        %v1587 = vmul.f32 %v1579, 0.16666667
        %v1588 = vmul.f32 %v1580, 0.16666667
        %v1589 = vmul.f32 %v1581, 0.16666667
        %v1590 = vmul.f32 %v1582, 0.16666667
        %v1591 = vld [vmem:[#allocation2] ss:$2 sm:$0xff]
        %s1592 = scalar_lea.vmem [#allocation2], 16
        %v1593 = vld [vmem:[%s1592] ss:$2 sm:$0xff]
        %s1594 = scalar_lea.vmem [#allocation2], 32
        %v1595 = vld [vmem:[%s1594] ss:$2 sm:$0xff]
        %s1596 = scalar_lea.vmem [#allocation2], 48
        %v1597 = vld [vmem:[%s1596] ss:$2 sm:$0xff]
        %s1598 = scalar_lea.vmem [#allocation2], 64
        %v1599 = vld [vmem:[%s1598] ss:$2 sm:$0xff]
        %s1600 = scalar_lea.vmem [#allocation2], 80
        %v1601 = vld [vmem:[%s1600] ss:$2 sm:$0xff]
        %s1602 = scalar_lea.vmem [#allocation2], 96
        %v1603 = vld [vmem:[%s1602] ss:$2 sm:$0xff]
        %s1604 = scalar_lea.vmem [#allocation2], 112
        %v1605 = vld [vmem:[%s1604] ss:$2 sm:$0xff]
        %s1606 = scalar_lea.vmem [#allocation2], 128
        %v1607 = vld [vmem:[%s1606] ss:$2 sm:$0xff]
        %s1608 = scalar_lea.vmem [#allocation2], 144
        %v1609 = vld [vmem:[%s1608] ss:$2 sm:$0xff]
        %s1610 = scalar_lea.vmem [#allocation2], 160
        %v1611 = vld [vmem:[%s1610] ss:$2 sm:$0xff]
        %s1612 = scalar_lea.vmem [#allocation2], 176
        %v1613 = vld [vmem:[%s1612] ss:$2 sm:$0xff]
        %s1614 = scalar_lea.vmem [#allocation2], 192
        %v1615 = vld [vmem:[%s1614] ss:$2 sm:$0xff]
        %s1616 = scalar_lea.vmem [#allocation2], 208
        %v1617 = vld [vmem:[%s1616] ss:$2 sm:$0xff]
        %s1618 = scalar_lea.vmem [#allocation2], 224
        %v1619 = vld [vmem:[%s1618] ss:$2 sm:$0xff]
        %s1620 = scalar_lea.vmem [#allocation2], 240
        %v1621 = vld [vmem:[%s1620] ss:$2 sm:$0xff]
        %s1622 = scalar_lea.vmem [#allocation2], 256
        %v1623 = vld [vmem:[%s1622] ss:$2 sm:$0xff]
        %s1624 = scalar_lea.vmem [#allocation2], 272
        %v1625 = vld [vmem:[%s1624] ss:$2 sm:$0xff]
        %s1626 = scalar_lea.vmem [#allocation2], 288
        %v1627 = vld [vmem:[%s1626] ss:$2 sm:$0xff]
        %s1628 = scalar_lea.vmem [#allocation2], 304
        %v1629 = vld [vmem:[%s1628] ss:$2 sm:$0xff]
        %s1630 = scalar_lea.vmem [#allocation2], 320
        %v1631 = vld [vmem:[%s1630] ss:$2 sm:$0xff]
        %s1632 = scalar_lea.vmem [#allocation2], 336
        %v1633 = vld [vmem:[%s1632] ss:$2 sm:$0xff]
        %s1634 = scalar_lea.vmem [#allocation2], 352
        %v1635 = vld [vmem:[%s1634] ss:$2 sm:$0xff]
        %s1636 = scalar_lea.vmem [#allocation2], 368
        %v1637 = vld [vmem:[%s1636] ss:$2 sm:$0xff]
        %s1638 = scalar_lea.vmem [#allocation2], 384
        %v1639 = vld [vmem:[%s1638] ss:$2 sm:$0xff]
        %s1640 = scalar_lea.vmem [#allocation2], 400
        %v1641 = vld [vmem:[%s1640] ss:$2 sm:$0xff]
        %s1642 = scalar_lea.vmem [#allocation2], 416
        %v1643 = vld [vmem:[%s1642] ss:$2 sm:$0xff]
        %s1644 = scalar_lea.vmem [#allocation2], 432
        %v1645 = vld [vmem:[%s1644] ss:$2 sm:$0xff]
        %s1646 = scalar_lea.vmem [#allocation2], 448
        %v1647 = vld [vmem:[%s1646] ss:$2 sm:$0xff]
        %s1648 = scalar_lea.vmem [#allocation2], 464
        %v1649 = vld [vmem:[%s1648] ss:$2 sm:$0xff]
        %s1650 = scalar_lea.vmem [#allocation2], 480
        %v1651 = vld [vmem:[%s1650] ss:$2 sm:$0xff]
        %s1652 = scalar_lea.vmem [#allocation2], 496
        %v1653 = vld [vmem:[%s1652] ss:$2 sm:$0xff]
        %v1654 = vadd.f32 %v1591, %v1583
        %v1655 = vadd.f32 %v1593, %v1583
        %v1656 = vadd.f32 %v1595, %v1584
        %v1657 = vadd.f32 %v1597, %v1584
        %v1658 = vadd.f32 %v1599, %v1585
        %v1659 = vadd.f32 %v1601, %v1585
        %v1660 = vadd.f32 %v1603, %v1586
        %v1661 = vadd.f32 %v1605, %v1586
        %v1662 = vadd.f32 %v1607, %v1583
        %v1663 = vadd.f32 %v1609, %v1583
        %v1664 = vadd.f32 %v1611, %v1584
        %v1665 = vadd.f32 %v1613, %v1584
        %v1666 = vadd.f32 %v1615, %v1585
        %v1667 = vadd.f32 %v1617, %v1585
        %v1668 = vadd.f32 %v1619, %v1586
        %v1669 = vadd.f32 %v1621, %v1586
        %v1670 = vadd.f32 %v1623, %v1587
        %v1671 = vadd.f32 %v1625, %v1587
        %v1672 = vadd.f32 %v1627, %v1588
        %v1673 = vadd.f32 %v1629, %v1588
        %v1674 = vadd.f32 %v1631, %v1589
        %v1675 = vadd.f32 %v1633, %v1589
        %v1676 = vadd.f32 %v1635, %v1590
        %v1677 = vadd.f32 %v1637, %v1590
        %v1678 = vadd.f32 %v1639, %v1587
        %v1679 = vadd.f32 %v1641, %v1587
        %v1680 = vadd.f32 %v1643, %v1588
        %v1681 = vadd.f32 %v1645, %v1588
        %v1682 = vadd.f32 %v1647, %v1589
        %v1683 = vadd.f32 %v1649, %v1589
        %v1684 = vadd.f32 %v1651, %v1590
        %v1685 = vadd.f32 %v1653, %v1590
        %1686 = vst [vmem:[#allocation2] ss:$2 sm:$0xff] %v1654
        %1687 = vst [vmem:[%s1592] ss:$2 sm:$0xff] %v1655
        %1688 = vst [vmem:[%s1594] ss:$2 sm:$0xff] %v1656
        %1689 = vst [vmem:[%s1596] ss:$2 sm:$0xff] %v1657
        %1690 = vst [vmem:[%s1598] ss:$2 sm:$0xff] %v1658
        %1691 = vst [vmem:[%s1600] ss:$2 sm:$0xff] %v1659
        %1692 = vst [vmem:[%s1602] ss:$2 sm:$0xff] %v1660
        %1693 = vst [vmem:[%s1604] ss:$2 sm:$0xff] %v1661
        %1694 = vst [vmem:[%s1606] ss:$2 sm:$0xff] %v1662
        %1695 = vst [vmem:[%s1608] ss:$2 sm:$0xff] %v1663
        %1696 = vst [vmem:[%s1610] ss:$2 sm:$0xff] %v1664
        %1697 = vst [vmem:[%s1612] ss:$2 sm:$0xff] %v1665
        %1698 = vst [vmem:[%s1614] ss:$2 sm:$0xff] %v1666
        %1699 = vst [vmem:[%s1616] ss:$2 sm:$0xff] %v1667
        %1700 = vst [vmem:[%s1618] ss:$2 sm:$0xff] %v1668
        %1701 = vst [vmem:[%s1620] ss:$2 sm:$0xff] %v1669
        %1702 = vst [vmem:[%s1622] ss:$2 sm:$0xff] %v1670
        %1703 = vst [vmem:[%s1624] ss:$2 sm:$0xff] %v1671
        %1704 = vst [vmem:[%s1626] ss:$2 sm:$0xff] %v1672
        %1705 = vst [vmem:[%s1628] ss:$2 sm:$0xff] %v1673
        %1706 = vst [vmem:[%s1630] ss:$2 sm:$0xff] %v1674
        %1707 = vst [vmem:[%s1632] ss:$2 sm:$0xff] %v1675
        %1708 = vst [vmem:[%s1634] ss:$2 sm:$0xff] %v1676
        %1709 = vst [vmem:[%s1636] ss:$2 sm:$0xff] %v1677
        %1710 = vst [vmem:[%s1638] ss:$2 sm:$0xff] %v1678
        %1711 = vst [vmem:[%s1640] ss:$2 sm:$0xff] %v1679
        %1712 = vst [vmem:[%s1642] ss:$2 sm:$0xff] %v1680
        %1713 = vst [vmem:[%s1644] ss:$2 sm:$0xff] %v1681
        %1714 = vst [vmem:[%s1646] ss:$2 sm:$0xff] %v1682
        %1715 = vst [vmem:[%s1648] ss:$2 sm:$0xff] %v1683
        %1716 = vst [vmem:[%s1650] ss:$2 sm:$0xff] %v1684
        %1717 = vst [vmem:[%s1652] ss:$2 sm:$0xff] %v1685
        %s1718 = scalar_lea.vmem [#allocation2], 1
        %v1719 = vld [vmem:[%s1718] ss:$2 sm:$0xff]
        %s1720 = scalar_lea.vmem [#allocation2], 17
        %v1721 = vld [vmem:[%s1720] ss:$2 sm:$0xff]
        %s1722 = scalar_lea.vmem [#allocation2], 33
        %v1723 = vld [vmem:[%s1722] ss:$2 sm:$0xff]
        %s1724 = scalar_lea.vmem [#allocation2], 49
        %v1725 = vld [vmem:[%s1724] ss:$2 sm:$0xff]
        %s1726 = scalar_lea.vmem [#allocation2], 65
        %v1727 = vld [vmem:[%s1726] ss:$2 sm:$0xff]
        %s1728 = scalar_lea.vmem [#allocation2], 81
        %v1729 = vld [vmem:[%s1728] ss:$2 sm:$0xff]
        %s1730 = scalar_lea.vmem [#allocation2], 97
        %v1731 = vld [vmem:[%s1730] ss:$2 sm:$0xff]
        %s1732 = scalar_lea.vmem [#allocation2], 113
        %v1733 = vld [vmem:[%s1732] ss:$2 sm:$0xff]
        %s1734 = scalar_lea.vmem [#allocation2], 129
        %v1735 = vld [vmem:[%s1734] ss:$2 sm:$0xff]
        %s1736 = scalar_lea.vmem [#allocation2], 145
        %v1737 = vld [vmem:[%s1736] ss:$2 sm:$0xff]
        %s1738 = scalar_lea.vmem [#allocation2], 161
        %v1739 = vld [vmem:[%s1738] ss:$2 sm:$0xff]
        %s1740 = scalar_lea.vmem [#allocation2], 177
        %v1741 = vld [vmem:[%s1740] ss:$2 sm:$0xff]
        %s1742 = scalar_lea.vmem [#allocation2], 193
        %v1743 = vld [vmem:[%s1742] ss:$2 sm:$0xff]
        %s1744 = scalar_lea.vmem [#allocation2], 209
        %v1745 = vld [vmem:[%s1744] ss:$2 sm:$0xff]
        %s1746 = scalar_lea.vmem [#allocation2], 225
        %v1747 = vld [vmem:[%s1746] ss:$2 sm:$0xff]
        %s1748 = scalar_lea.vmem [#allocation2], 241
        %v1749 = vld [vmem:[%s1748] ss:$2 sm:$0xff]
        %s1750 = scalar_lea.vmem [#allocation2], 257
        %v1751 = vld [vmem:[%s1750] ss:$2 sm:$0xff]
        %s1752 = scalar_lea.vmem [#allocation2], 273
        %v1753 = vld [vmem:[%s1752] ss:$2 sm:$0xff]
        %s1754 = scalar_lea.vmem [#allocation2], 289
        %v1755 = vld [vmem:[%s1754] ss:$2 sm:$0xff]
        %s1756 = scalar_lea.vmem [#allocation2], 305
        %v1757 = vld [vmem:[%s1756] ss:$2 sm:$0xff]
        %s1758 = scalar_lea.vmem [#allocation2], 321
        %v1759 = vld [vmem:[%s1758] ss:$2 sm:$0xff]
        %s1760 = scalar_lea.vmem [#allocation2], 337
        %v1761 = vld [vmem:[%s1760] ss:$2 sm:$0xff]
        %s1762 = scalar_lea.vmem [#allocation2], 353
        %v1763 = vld [vmem:[%s1762] ss:$2 sm:$0xff]
        %s1764 = scalar_lea.vmem [#allocation2], 369
        %v1765 = vld [vmem:[%s1764] ss:$2 sm:$0xff]
        %s1766 = scalar_lea.vmem [#allocation2], 385
        %v1767 = vld [vmem:[%s1766] ss:$2 sm:$0xff]
        %s1768 = scalar_lea.vmem [#allocation2], 401
        %v1769 = vld [vmem:[%s1768] ss:$2 sm:$0xff]
        %s1770 = scalar_lea.vmem [#allocation2], 417
        %v1771 = vld [vmem:[%s1770] ss:$2 sm:$0xff]
        %s1772 = scalar_lea.vmem [#allocation2], 433
        %v1773 = vld [vmem:[%s1772] ss:$2 sm:$0xff]
        %s1774 = scalar_lea.vmem [#allocation2], 449
        %v1775 = vld [vmem:[%s1774] ss:$2 sm:$0xff]
        %s1776 = scalar_lea.vmem [#allocation2], 465
        %v1777 = vld [vmem:[%s1776] ss:$2 sm:$0xff]
        %s1778 = scalar_lea.vmem [#allocation2], 481
        %v1779 = vld [vmem:[%s1778] ss:$2 sm:$0xff]
        %s1780 = scalar_lea.vmem [#allocation2], 497
        %v1781 = vld [vmem:[%s1780] ss:$2 sm:$0xff]
        %v1782 = vadd.f32 %v1719, %v1583
        %v1783 = vadd.f32 %v1721, %v1583
        %v1784 = vadd.f32 %v1723, %v1584
        %v1785 = vadd.f32 %v1725, %v1584
        %v1786 = vadd.f32 %v1727, %v1585
        %v1787 = vadd.f32 %v1729, %v1585
        %v1788 = vadd.f32 %v1731, %v1586
        %v1789 = vadd.f32 %v1733, %v1586
        %v1790 = vadd.f32 %v1735, %v1583
        %v1791 = vadd.f32 %v1737, %v1583
        %v1792 = vadd.f32 %v1739, %v1584
        %v1793 = vadd.f32 %v1741, %v1584
        %v1794 = vadd.f32 %v1743, %v1585
        %v1795 = vadd.f32 %v1745, %v1585
        %v1796 = vadd.f32 %v1747, %v1586
        %v1797 = vadd.f32 %v1749, %v1586
        %v1798 = vadd.f32 %v1751, %v1587
        %v1799 = vadd.f32 %v1753, %v1587
        %v1800 = vadd.f32 %v1755, %v1588
        %v1801 = vadd.f32 %v1757, %v1588
        %v1802 = vadd.f32 %v1759, %v1589
        %v1803 = vadd.f32 %v1761, %v1589
        %v1804 = vadd.f32 %v1763, %v1590
        %v1805 = vadd.f32 %v1765, %v1590
        %v1806 = vadd.f32 %v1767, %v1587
        %v1807 = vadd.f32 %v1769, %v1587
        %v1808 = vadd.f32 %v1771, %v1588
        %v1809 = vadd.f32 %v1773, %v1588
        %v1810 = vadd.f32 %v1775, %v1589
        %v1811 = vadd.f32 %v1777, %v1589
        %v1812 = vadd.f32 %v1779, %v1590
        %v1813 = vadd.f32 %v1781, %v1590
        %1814 = vst [vmem:[%s1718] ss:$2 sm:$0xff] %v1782
        %1815 = vst [vmem:[%s1720] ss:$2 sm:$0xff] %v1783
        %1816 = vst [vmem:[%s1722] ss:$2 sm:$0xff] %v1784
        %1817 = vst [vmem:[%s1724] ss:$2 sm:$0xff] %v1785
        %1818 = vst [vmem:[%s1726] ss:$2 sm:$0xff] %v1786
        %1819 = vst [vmem:[%s1728] ss:$2 sm:$0xff] %v1787
        %1820 = vst [vmem:[%s1730] ss:$2 sm:$0xff] %v1788
        %1821 = vst [vmem:[%s1732] ss:$2 sm:$0xff] %v1789
        %1822 = vst [vmem:[%s1734] ss:$2 sm:$0xff] %v1790
        %1823 = vst [vmem:[%s1736] ss:$2 sm:$0xff] %v1791
        %1824 = vst [vmem:[%s1738] ss:$2 sm:$0xff] %v1792
        %1825 = vst [vmem:[%s1740] ss:$2 sm:$0xff] %v1793
        %1826 = vst [vmem:[%s1742] ss:$2 sm:$0xff] %v1794
        %1827 = vst [vmem:[%s1744] ss:$2 sm:$0xff] %v1795
        %1828 = vst [vmem:[%s1746] ss:$2 sm:$0xff] %v1796
        %1829 = vst [vmem:[%s1748] ss:$2 sm:$0xff] %v1797
        %1830 = vst [vmem:[%s1750] ss:$2 sm:$0xff] %v1798
        %1831 = vst [vmem:[%s1752] ss:$2 sm:$0xff] %v1799
        %1832 = vst [vmem:[%s1754] ss:$2 sm:$0xff] %v1800
        %1833 = vst [vmem:[%s1756] ss:$2 sm:$0xff] %v1801
        %1834 = vst [vmem:[%s1758] ss:$2 sm:$0xff] %v1802
        %1835 = vst [vmem:[%s1760] ss:$2 sm:$0xff] %v1803
        %1836 = vst [vmem:[%s1762] ss:$2 sm:$0xff] %v1804
        %1837 = vst [vmem:[%s1764] ss:$2 sm:$0xff] %v1805
        %1838 = vst [vmem:[%s1766] ss:$2 sm:$0xff] %v1806
        %1839 = vst [vmem:[%s1768] ss:$2 sm:$0xff] %v1807
        %1840 = vst [vmem:[%s1770] ss:$2 sm:$0xff] %v1808
        %1841 = vst [vmem:[%s1772] ss:$2 sm:$0xff] %v1809
        %1842 = vst [vmem:[%s1774] ss:$2 sm:$0xff] %v1810
        %1843 = vst [vmem:[%s1776] ss:$2 sm:$0xff] %v1811
        %1844 = vst [vmem:[%s1778] ss:$2 sm:$0xff] %v1812
        %1845 = vst [vmem:[%s1780] ss:$2 sm:$0xff] %v1813
        %v1846 = vld [vmem:[#allocation2] sm:$0xff]
        %v1847 = vld [vmem:[#allocation2 + $0x8] sm:$0xff]
        %v1848 = vld [vmem:[#allocation2 + $0x10] sm:$0xff]
        %v1849 = vld [vmem:[#allocation2 + $0x18] sm:$0xff]
        %v1850 = vld [vmem:[#allocation2 + $0x20] sm:$0xff]
        %v1851 = vld [vmem:[#allocation2 + $0x28] sm:$0xff]
        %v1852 = vld [vmem:[#allocation2 + $0x30] sm:$0xff]
        %v1853 = vld [vmem:[#allocation2 + $0x38] sm:$0xff]
        %v1854 = vld [vmem:[#allocation2 + $0x40] sm:$0xff]
        %v1855 = vld [vmem:[#allocation2 + $0x48] sm:$0xff]
        %v1856 = vld [vmem:[#allocation2 + $0x50] sm:$0xff]
        %v1857 = vld [vmem:[#allocation2 + $0x58] sm:$0xff]
        %v1858 = vld [vmem:[#allocation2 + $0x60] sm:$0xff]
        %v1859 = vld [vmem:[#allocation2 + $0x68] sm:$0xff]
        %v1860 = vld [vmem:[#allocation2 + $0x70] sm:$0xff]
        %v1861 = vld [vmem:[#allocation2 + $0x78] sm:$0xff]
        %v1862 = vld [vmem:[#allocation2 + $0x80] sm:$0xff]
        %v1863 = vld [vmem:[#allocation2 + $0x88] sm:$0xff]
        %v1864 = vld [vmem:[#allocation2 + $0x90] sm:$0xff]
        %v1865 = vld [vmem:[#allocation2 + $0x98] sm:$0xff]
        %v1866 = vld [vmem:[#allocation2 + $0xa0] sm:$0xff]
        %v1867 = vld [vmem:[#allocation2 + $0xa8] sm:$0xff]
        %v1868 = vld [vmem:[#allocation2 + $0xb0] sm:$0xff]
        %v1869 = vld [vmem:[#allocation2 + $0xb8] sm:$0xff]
        %v1870 = vld [vmem:[#allocation2 + $0xc0] sm:$0xff]
        %v1871 = vld [vmem:[#allocation2 + $0xc8] sm:$0xff]
        %v1872 = vld [vmem:[#allocation2 + $0xd0] sm:$0xff]
        %v1873 = vld [vmem:[#allocation2 + $0xd8] sm:$0xff]
        %v1874 = vld [vmem:[#allocation2 + $0xe0] sm:$0xff]
        %v1875 = vld [vmem:[#allocation2 + $0xe8] sm:$0xff]
        %v1876 = vld [vmem:[#allocation2 + $0xf0] sm:$0xff]
        %v1877 = vld [vmem:[#allocation2 + $0xf8] sm:$0xff]
        %v1878 = vld [vmem:[#allocation2 + $0x100] sm:$0xff]
        %v1879 = vld [vmem:[#allocation2 + $0x108] sm:$0xff]
        %v1880 = vld [vmem:[#allocation2 + $0x110] sm:$0xff]
        %v1881 = vld [vmem:[#allocation2 + $0x118] sm:$0xff]
        %v1882 = vld [vmem:[#allocation2 + $0x120] sm:$0xff]
        %v1883 = vld [vmem:[#allocation2 + $0x128] sm:$0xff]
        %v1884 = vld [vmem:[#allocation2 + $0x130] sm:$0xff]
        %v1885 = vld [vmem:[#allocation2 + $0x138] sm:$0xff]
        %v1886 = vld [vmem:[#allocation2 + $0x140] sm:$0xff]
        %v1887 = vld [vmem:[#allocation2 + $0x148] sm:$0xff]
        %v1888 = vld [vmem:[#allocation2 + $0x150] sm:$0xff]
        %v1889 = vld [vmem:[#allocation2 + $0x158] sm:$0xff]
        %v1890 = vld [vmem:[#allocation2 + $0x160] sm:$0xff]
        %v1891 = vld [vmem:[#allocation2 + $0x168] sm:$0xff]
        %v1892 = vld [vmem:[#allocation2 + $0x170] sm:$0xff]
        %v1893 = vld [vmem:[#allocation2 + $0x178] sm:$0xff]
        %v1894 = vld [vmem:[#allocation2 + $0x180] sm:$0xff]
        %v1895 = vld [vmem:[#allocation2 + $0x188] sm:$0xff]
        %v1896 = vld [vmem:[#allocation2 + $0x190] sm:$0xff]
        %v1897 = vld [vmem:[#allocation2 + $0x198] sm:$0xff]
        %v1898 = vld [vmem:[#allocation2 + $0x1a0] sm:$0xff]
        %v1899 = vld [vmem:[#allocation2 + $0x1a8] sm:$0xff]
        %v1900 = vld [vmem:[#allocation2 + $0x1b0] sm:$0xff]
        %v1901 = vld [vmem:[#allocation2 + $0x1b8] sm:$0xff]
        %v1902 = vld [vmem:[#allocation2 + $0x1c0] sm:$0xff]
        %v1903 = vld [vmem:[#allocation2 + $0x1c8] sm:$0xff]
        %v1904 = vld [vmem:[#allocation2 + $0x1d0] sm:$0xff]
        %v1905 = vld [vmem:[#allocation2 + $0x1d8] sm:$0xff]
        %v1906 = vld [vmem:[#allocation2 + $0x1e0] sm:$0xff]
        %v1907 = vld [vmem:[#allocation2 + $0x1e8] sm:$0xff]
        %v1908 = vld [vmem:[#allocation2 + $0x1f0] sm:$0xff]
        %v1909 = vld [vmem:[#allocation2 + $0x1f8] sm:$0xff]
        %v1910 = vpack.c.bf16 %v1847, %v1846
        %v1911 = vpack.c.bf16 %v1849, %v1848
        %v1912 = vpack.c.bf16 %v1851, %v1850
        %v1913 = vpack.c.bf16 %v1853, %v1852
        %v1914 = vpack.c.bf16 %v1855, %v1854
        %v1915 = vpack.c.bf16 %v1857, %v1856
        %v1916 = vpack.c.bf16 %v1859, %v1858
        %v1917 = vpack.c.bf16 %v1861, %v1860
        %v1918 = vpack.c.bf16 %v1863, %v1862
        %v1919 = vpack.c.bf16 %v1865, %v1864
        %v1920 = vpack.c.bf16 %v1867, %v1866
        %v1921 = vpack.c.bf16 %v1869, %v1868
        %v1922 = vpack.c.bf16 %v1871, %v1870
        %v1923 = vpack.c.bf16 %v1873, %v1872
        %v1924 = vpack.c.bf16 %v1875, %v1874
        %v1925 = vpack.c.bf16 %v1877, %v1876
        %v1926 = vpack.c.bf16 %v1879, %v1878
        %v1927 = vpack.c.bf16 %v1881, %v1880
        %v1928 = vpack.c.bf16 %v1883, %v1882
        %v1929 = vpack.c.bf16 %v1885, %v1884
        %v1930 = vpack.c.bf16 %v1887, %v1886
        %v1931 = vpack.c.bf16 %v1889, %v1888
        %v1932 = vpack.c.bf16 %v1891, %v1890
        %v1933 = vpack.c.bf16 %v1893, %v1892
        %v1934 = vpack.c.bf16 %v1895, %v1894
        %v1935 = vpack.c.bf16 %v1897, %v1896
        %v1936 = vpack.c.bf16 %v1899, %v1898
        %v1937 = vpack.c.bf16 %v1901, %v1900
        %v1938 = vpack.c.bf16 %v1903, %v1902
        %v1939 = vpack.c.bf16 %v1905, %v1904
        %v1940 = vpack.c.bf16 %v1907, %v1906
        %v1941 = vpack.c.bf16 %v1909, %v1908
        %v1942 = vld [vmem:[#allocation11] sm:$0xf]
        %v1943 = vld [vmem:[#allocation11 + $0x4] sm:$0xf]
        %v1944 = vld [vmem:[#allocation11 + $0x8] sm:$0xf]
        %v1945 = vld [vmem:[#allocation11 + $0xc] sm:$0xf]
        %v1946 = vld [vmem:[#allocation11 + $0x10] sm:$0xf]
        %v1947 = vld [vmem:[#allocation11 + $0x14] sm:$0xf]
        %v1948 = vld [vmem:[#allocation11 + $0x18] sm:$0xf]
        %v1949 = vld [vmem:[#allocation11 + $0x1c] sm:$0xf]
        %v1950 = vld [vmem:[#allocation11 + $0x20] sm:$0xf]
        %v1951 = vld [vmem:[#allocation11 + $0x24] sm:$0xf]
        %v1952 = vld [vmem:[#allocation11 + $0x28] sm:$0xf]
        %v1953 = vld [vmem:[#allocation11 + $0x2c] sm:$0xf]
        %v1954 = vld [vmem:[#allocation11 + $0x30] sm:$0xf]
        %v1955 = vld [vmem:[#allocation11 + $0x34] sm:$0xf]
        %v1956 = vld [vmem:[#allocation11 + $0x38] sm:$0xf]
        %v1957 = vld [vmem:[#allocation11 + $0x3c] sm:$0xf]
        %v1958 = vld [vmem:[%s7] sm:$0x1]
        %v1960 = vperm.slane %v1958, 0
        %v1978 = vunpack.c.l.b16 %v1942
        %v1979 = vunpack.c.l.b16 %v1943
        %v1980 = vunpack.c.l.b16 %v1944
        %v1981 = vunpack.c.l.b16 %v1945
        %v1982 = vunpack.c.l.b16 %v1946
        %v1983 = vunpack.c.l.b16 %v1947
        %v1984 = vunpack.c.l.b16 %v1948
        %v1985 = vunpack.c.l.b16 %v1949
        %v1986 = vunpack.c.l.b16 %v1950
        %v1987 = vunpack.c.l.b16 %v1951
        %v1988 = vunpack.c.l.b16 %v1952
        %v1989 = vunpack.c.l.b16 %v1953
        %v1990 = vunpack.c.l.b16 %v1954
        %v1991 = vunpack.c.l.b16 %v1955
        %v1992 = vunpack.c.l.b16 %v1956
        %v1993 = vunpack.c.l.b16 %v1957
        %v1994 = vpack.c.b16 %v1979, %v1978
        %v1995 = vpack.c.b16 %v1981, %v1980
        %v1996 = vpack.c.b16 %v1983, %v1982
        %v1997 = vpack.c.b16 %v1985, %v1984
        %v1998 = vpack.c.b16 %v1987, %v1986
        %v1999 = vpack.c.b16 %v1989, %v1988
        %v2000 = vpack.c.b16 %v1991, %v1990
        %v2001 = vpack.c.b16 %v1993, %v1992
        %2010 = vmatpush.bf16.msra.mxu0 %v2001
        %2011 = vmatpush.bf16.msra.mxu0 %v2000
        %2012 = vmatpush.bf16.msra.mxu0 %v1999
        %2013 = vmatpush.bf16.msra.mxu0 %v1998
        %2014 = vmatpush.bf16.msra.mxu0 %v1997
        %2015 = vmatpush.bf16.msra.mxu0 %v1996
        %2016 = vmatpush.bf16.msra.mxu0 %v1995
        %2017 = vmatpush.bf16.msra.mxu0 %v1994
        %2018 = vmatmul.bf16.gmra.mxu0 %v1910
        %v2019 = vpop.f32.mrf.mxu0
        %v2020 = vadd.f32 %v1960, %v2019
        %v2021 = vpop.f32.mrf.mxu0
        %v2022 = vadd.f32 %v1960, %v2021
        %2023 = vmatmul.bf16.gmra.mxu0 %v1911
        %v2024 = vpop.f32.mrf.mxu0
        %v2025 = vadd.f32 %v1960, %v2024
        %v2026 = vpop.f32.mrf.mxu0
        %v2027 = vadd.f32 %v1960, %v2026
        %2028 = vmatmul.bf16.gmra.mxu0 %v1912
        %v2029 = vpop.f32.mrf.mxu0
        %v2030 = vadd.f32 %v1960, %v2029
        %v2031 = vpop.f32.mrf.mxu0
        %v2032 = vadd.f32 %v1960, %v2031
        %2033 = vmatmul.bf16.gmra.mxu0 %v1913
        %v2034 = vpop.f32.mrf.mxu0
        %v2035 = vadd.f32 %v1960, %v2034
        %v2036 = vpop.f32.mrf.mxu0
        %v2037 = vadd.f32 %v1960, %v2036
        %2038 = vmatmul.bf16.gmra.mxu0 %v1914
        %v2039 = vpop.f32.mrf.mxu0
        %v2040 = vadd.f32 %v1960, %v2039
        %v2041 = vpop.f32.mrf.mxu0
        %v2042 = vadd.f32 %v1960, %v2041
        %2043 = vmatmul.bf16.gmra.mxu0 %v1915
        %v2044 = vpop.f32.mrf.mxu0
        %v2045 = vadd.f32 %v1960, %v2044
        %v2046 = vpop.f32.mrf.mxu0
        %v2047 = vadd.f32 %v1960, %v2046
        %2048 = vmatmul.bf16.gmra.mxu0 %v1916
        %v2049 = vpop.f32.mrf.mxu0
        %v2050 = vadd.f32 %v1960, %v2049
        %v2051 = vpop.f32.mrf.mxu0
        %v2052 = vadd.f32 %v1960, %v2051
        %2053 = vmatmul.bf16.gmra.mxu0 %v1917
        %v2054 = vpop.f32.mrf.mxu0
        %v2055 = vadd.f32 %v1960, %v2054
        %v2056 = vpop.f32.mrf.mxu0
        %v2057 = vadd.f32 %v1960, %v2056
        %2058 = vmatmul.bf16.gmra.mxu0 %v1918
        %v2059 = vpop.f32.mrf.mxu0
        %v2060 = vadd.f32 %v1960, %v2059
        %v2061 = vpop.f32.mrf.mxu0
        %v2062 = vadd.f32 %v1960, %v2061
        %2063 = vmatmul.bf16.gmra.mxu0 %v1919
        %v2064 = vpop.f32.mrf.mxu0
        %v2065 = vadd.f32 %v1960, %v2064
        %v2066 = vpop.f32.mrf.mxu0
        %v2067 = vadd.f32 %v1960, %v2066
        %2068 = vmatmul.bf16.gmra.mxu0 %v1920
        %v2069 = vpop.f32.mrf.mxu0
        %v2070 = vadd.f32 %v1960, %v2069
        %v2071 = vpop.f32.mrf.mxu0
        %v2072 = vadd.f32 %v1960, %v2071
        %2073 = vmatmul.bf16.gmra.mxu0 %v1921
        %v2074 = vpop.f32.mrf.mxu0
        %v2075 = vadd.f32 %v1960, %v2074
        %v2076 = vpop.f32.mrf.mxu0
        %v2077 = vadd.f32 %v1960, %v2076
        %2078 = vmatmul.bf16.gmra.mxu0 %v1922
        %v2079 = vpop.f32.mrf.mxu0
        %v2080 = vadd.f32 %v1960, %v2079
        %v2081 = vpop.f32.mrf.mxu0
        %v2082 = vadd.f32 %v1960, %v2081
        %2083 = vmatmul.bf16.gmra.mxu0 %v1923
        %v2084 = vpop.f32.mrf.mxu0
        %v2085 = vadd.f32 %v1960, %v2084
        %v2086 = vpop.f32.mrf.mxu0
        %v2087 = vadd.f32 %v1960, %v2086
        %2088 = vmatmul.bf16.gmra.mxu0 %v1924
        %v2089 = vpop.f32.mrf.mxu0
        %v2090 = vadd.f32 %v1960, %v2089
        %v2091 = vpop.f32.mrf.mxu0
        %v2092 = vadd.f32 %v1960, %v2091
        %2093 = vmatmul.bf16.gmra.mxu0 %v1925
        %v2094 = vpop.f32.mrf.mxu0
        %v2095 = vadd.f32 %v1960, %v2094
        %v2096 = vpop.f32.mrf.mxu0
        %v2097 = vadd.f32 %v1960, %v2096
        %2098 = vmatmul.bf16.gmra.mxu0 %v1926
        %v2099 = vpop.f32.mrf.mxu0
        %v2100 = vadd.f32 %v1960, %v2099
        %v2101 = vpop.f32.mrf.mxu0
        %v2102 = vadd.f32 %v1960, %v2101
        %2103 = vmatmul.bf16.gmra.mxu0 %v1927
        %v2104 = vpop.f32.mrf.mxu0
        %v2105 = vadd.f32 %v1960, %v2104
        %v2106 = vpop.f32.mrf.mxu0
        %v2107 = vadd.f32 %v1960, %v2106
        %2108 = vmatmul.bf16.gmra.mxu0 %v1928
        %v2109 = vpop.f32.mrf.mxu0
        %v2110 = vadd.f32 %v1960, %v2109
        %v2111 = vpop.f32.mrf.mxu0
        %v2112 = vadd.f32 %v1960, %v2111
        %2113 = vmatmul.bf16.gmra.mxu0 %v1929
        %v2114 = vpop.f32.mrf.mxu0
        %v2115 = vadd.f32 %v1960, %v2114
        %v2116 = vpop.f32.mrf.mxu0
        %v2117 = vadd.f32 %v1960, %v2116
        %2118 = vmatmul.bf16.gmra.mxu0 %v1930
        %v2119 = vpop.f32.mrf.mxu0
        %v2120 = vadd.f32 %v1960, %v2119
        %v2121 = vpop.f32.mrf.mxu0
        %v2122 = vadd.f32 %v1960, %v2121
        %2123 = vmatmul.bf16.gmra.mxu0 %v1931
        %v2124 = vpop.f32.mrf.mxu0
        %v2125 = vadd.f32 %v1960, %v2124
        %v2126 = vpop.f32.mrf.mxu0
        %v2127 = vadd.f32 %v1960, %v2126
        %2128 = vmatmul.bf16.gmra.mxu0 %v1932
        %v2129 = vpop.f32.mrf.mxu0
        %v2130 = vadd.f32 %v1960, %v2129
        %v2131 = vpop.f32.mrf.mxu0
        %v2132 = vadd.f32 %v1960, %v2131
        %2133 = vmatmul.bf16.gmra.mxu0 %v1933
        %v2134 = vpop.f32.mrf.mxu0
        %v2135 = vadd.f32 %v1960, %v2134
        %v2136 = vpop.f32.mrf.mxu0
        %v2137 = vadd.f32 %v1960, %v2136
        %2138 = vmatmul.bf16.gmra.mxu0 %v1934
        %v2139 = vpop.f32.mrf.mxu0
        %v2140 = vadd.f32 %v1960, %v2139
        %v2141 = vpop.f32.mrf.mxu0
        %v2142 = vadd.f32 %v1960, %v2141
        %2143 = vmatmul.bf16.gmra.mxu0 %v1935
        %v2144 = vpop.f32.mrf.mxu0
        %v2145 = vadd.f32 %v1960, %v2144
        %v2146 = vpop.f32.mrf.mxu0
        %v2147 = vadd.f32 %v1960, %v2146
        %2148 = vmatmul.bf16.gmra.mxu0 %v1936
        %v2149 = vpop.f32.mrf.mxu0
        %v2150 = vadd.f32 %v1960, %v2149
        %v2151 = vpop.f32.mrf.mxu0
        %v2152 = vadd.f32 %v1960, %v2151
        %2153 = vmatmul.bf16.gmra.mxu0 %v1937
        %v2154 = vpop.f32.mrf.mxu0
        %v2155 = vadd.f32 %v1960, %v2154
        %v2156 = vpop.f32.mrf.mxu0
        %v2157 = vadd.f32 %v1960, %v2156
        %2158 = vmatmul.bf16.gmra.mxu0 %v1938
        %v2159 = vpop.f32.mrf.mxu0
        %v2160 = vadd.f32 %v1960, %v2159
        %v2161 = vpop.f32.mrf.mxu0
        %v2162 = vadd.f32 %v1960, %v2161
        %2163 = vmatmul.bf16.gmra.mxu0 %v1939
        %v2164 = vpop.f32.mrf.mxu0
        %v2165 = vadd.f32 %v1960, %v2164
        %v2166 = vpop.f32.mrf.mxu0
        %v2167 = vadd.f32 %v1960, %v2166
        %2168 = vmatmul.bf16.gmra.mxu0 %v1940
        %v2169 = vpop.f32.mrf.mxu0
        %v2170 = vadd.f32 %v1960, %v2169
        %v2171 = vpop.f32.mrf.mxu0
        %v2172 = vadd.f32 %v1960, %v2171
        %2173 = vmatmul.bf16.gmra.mxu0 %v1941
        %v2174 = vpop.f32.mrf.mxu0
        %v2175 = vadd.f32 %v1960, %v2174
        %v2176 = vpop.f32.mrf.mxu0
        %v2177 = vadd.f32 %v1960, %v2176
        %2178 = vdwg.mxu0
        %v2179 = vadd.f32 %v2020, 3.0
        %v2180 = vadd.f32 %v2022, 3.0
        %v2181 = vadd.f32 %v2025, 3.0
        %v2182 = vadd.f32 %v2027, 3.0
        %v2183 = vadd.f32 %v2030, 3.0
        %v2184 = vadd.f32 %v2032, 3.0
        %v2185 = vadd.f32 %v2035, 3.0
        %v2186 = vadd.f32 %v2037, 3.0
        %v2187 = vadd.f32 %v2040, 3.0
        %v2188 = vadd.f32 %v2042, 3.0
        %v2189 = vadd.f32 %v2045, 3.0
        %v2190 = vadd.f32 %v2047, 3.0
        %v2191 = vadd.f32 %v2050, 3.0
        %v2192 = vadd.f32 %v2052, 3.0
        %v2193 = vadd.f32 %v2055, 3.0
        %v2194 = vadd.f32 %v2057, 3.0
        %v2195 = vadd.f32 %v2060, 3.0
        %v2196 = vadd.f32 %v2062, 3.0
        %v2197 = vadd.f32 %v2065, 3.0
        %v2198 = vadd.f32 %v2067, 3.0
        %v2199 = vadd.f32 %v2070, 3.0
        %v2200 = vadd.f32 %v2072, 3.0
        %v2201 = vadd.f32 %v2075, 3.0
        %v2202 = vadd.f32 %v2077, 3.0
        %v2203 = vadd.f32 %v2080, 3.0
        %v2204 = vadd.f32 %v2082, 3.0
        %v2205 = vadd.f32 %v2085, 3.0
        %v2206 = vadd.f32 %v2087, 3.0
        %v2207 = vadd.f32 %v2090, 3.0
        %v2208 = vadd.f32 %v2092, 3.0
        %v2209 = vadd.f32 %v2095, 3.0
        %v2210 = vadd.f32 %v2097, 3.0
        %v2211 = vadd.f32 %v2100, 3.0
        %v2212 = vadd.f32 %v2102, 3.0
        %v2213 = vadd.f32 %v2105, 3.0
        %v2214 = vadd.f32 %v2107, 3.0
        %v2215 = vadd.f32 %v2110, 3.0
        %v2216 = vadd.f32 %v2112, 3.0
        %v2217 = vadd.f32 %v2115, 3.0
        %v2218 = vadd.f32 %v2117, 3.0
        %v2219 = vadd.f32 %v2120, 3.0
        %v2220 = vadd.f32 %v2122, 3.0
        %v2221 = vadd.f32 %v2125, 3.0
        %v2222 = vadd.f32 %v2127, 3.0
        %v2223 = vadd.f32 %v2130, 3.0
        %v2224 = vadd.f32 %v2132, 3.0
        %v2225 = vadd.f32 %v2135, 3.0
        %v2226 = vadd.f32 %v2137, 3.0
        %v2227 = vadd.f32 %v2140, 3.0
        %v2228 = vadd.f32 %v2142, 3.0
        %v2229 = vadd.f32 %v2145, 3.0
        %v2230 = vadd.f32 %v2147, 3.0
        %v2231 = vadd.f32 %v2150, 3.0
        %v2232 = vadd.f32 %v2152, 3.0
        %v2233 = vadd.f32 %v2155, 3.0
        %v2234 = vadd.f32 %v2157, 3.0
        %v2235 = vadd.f32 %v2160, 3.0
        %v2236 = vadd.f32 %v2162, 3.0
        %v2237 = vadd.f32 %v2165, 3.0
        %v2238 = vadd.f32 %v2167, 3.0
        %v2239 = vadd.f32 %v2170, 3.0
        %v2240 = vadd.f32 %v2172, 3.0
        %v2241 = vadd.f32 %v2175, 3.0
        %v2242 = vadd.f32 %v2177, 3.0
        %v2243 = vmax.f32 %v2179, 0.0
        %v2244 = vmax.f32 %v2180, 0.0
        %v2245 = vmax.f32 %v2181, 0.0
        %v2246 = vmax.f32 %v2182, 0.0
        %v2247 = vmax.f32 %v2183, 0.0
        %v2248 = vmax.f32 %v2184, 0.0
        %v2249 = vmax.f32 %v2185, 0.0
        %v2250 = vmax.f32 %v2186, 0.0
        %v2251 = vmax.f32 %v2187, 0.0
        %v2252 = vmax.f32 %v2188, 0.0
        %v2253 = vmax.f32 %v2189, 0.0
        %v2254 = vmax.f32 %v2190, 0.0
        %v2255 = vmax.f32 %v2191, 0.0
        %v2256 = vmax.f32 %v2192, 0.0
        %v2257 = vmax.f32 %v2193, 0.0
        %v2258 = vmax.f32 %v2194, 0.0
        %v2259 = vmax.f32 %v2195, 0.0
        %v2260 = vmax.f32 %v2196, 0.0
        %v2261 = vmax.f32 %v2197, 0.0
        %v2262 = vmax.f32 %v2198, 0.0
        %v2263 = vmax.f32 %v2199, 0.0
        %v2264 = vmax.f32 %v2200, 0.0
        %v2265 = vmax.f32 %v2201, 0.0
        %v2266 = vmax.f32 %v2202, 0.0
        %v2267 = vmax.f32 %v2203, 0.0
        %v2268 = vmax.f32 %v2204, 0.0
        %v2269 = vmax.f32 %v2205, 0.0
        %v2270 = vmax.f32 %v2206, 0.0
        %v2271 = vmax.f32 %v2207, 0.0
        %v2272 = vmax.f32 %v2208, 0.0
        %v2273 = vmax.f32 %v2209, 0.0
        %v2274 = vmax.f32 %v2210, 0.0
        %v2275 = vmax.f32 %v2211, 0.0
        %v2276 = vmax.f32 %v2212, 0.0
        %v2277 = vmax.f32 %v2213, 0.0
        %v2278 = vmax.f32 %v2214, 0.0
        %v2279 = vmax.f32 %v2215, 0.0
        %v2280 = vmax.f32 %v2216, 0.0
        %v2281 = vmax.f32 %v2217, 0.0
        %v2282 = vmax.f32 %v2218, 0.0
        %v2283 = vmax.f32 %v2219, 0.0
        %v2284 = vmax.f32 %v2220, 0.0
        %v2285 = vmax.f32 %v2221, 0.0
        %v2286 = vmax.f32 %v2222, 0.0
        %v2287 = vmax.f32 %v2223, 0.0
        %v2288 = vmax.f32 %v2224, 0.0
        %v2289 = vmax.f32 %v2225, 0.0
        %v2290 = vmax.f32 %v2226, 0.0
        %v2291 = vmax.f32 %v2227, 0.0
        %v2292 = vmax.f32 %v2228, 0.0
        %v2293 = vmax.f32 %v2229, 0.0
        %v2294 = vmax.f32 %v2230, 0.0
        %v2295 = vmax.f32 %v2231, 0.0
        %v2296 = vmax.f32 %v2232, 0.0
        %v2297 = vmax.f32 %v2233, 0.0
        %v2298 = vmax.f32 %v2234, 0.0
        %v2299 = vmax.f32 %v2235, 0.0
        %v2300 = vmax.f32 %v2236, 0.0
        %v2301 = vmax.f32 %v2237, 0.0
        %v2302 = vmax.f32 %v2238, 0.0
        %v2303 = vmax.f32 %v2239, 0.0
        %v2304 = vmax.f32 %v2240, 0.0
        %v2305 = vmax.f32 %v2241, 0.0
        %v2306 = vmax.f32 %v2242, 0.0
        %v2307 = vmin.f32 %v2243, 6.0
        %v2308 = vmin.f32 %v2244, 6.0
        %v2309 = vmin.f32 %v2245, 6.0
        %v2310 = vmin.f32 %v2246, 6.0
        %v2311 = vmin.f32 %v2247, 6.0
        %v2312 = vmin.f32 %v2248, 6.0
        %v2313 = vmin.f32 %v2249, 6.0
        %v2314 = vmin.f32 %v2250, 6.0
        %v2315 = vmin.f32 %v2251, 6.0
        %v2316 = vmin.f32 %v2252, 6.0
        %v2317 = vmin.f32 %v2253, 6.0
        %v2318 = vmin.f32 %v2254, 6.0
        %v2319 = vmin.f32 %v2255, 6.0
        %v2320 = vmin.f32 %v2256, 6.0
        %v2321 = vmin.f32 %v2257, 6.0
        %v2322 = vmin.f32 %v2258, 6.0
        %v2323 = vmin.f32 %v2259, 6.0
        %v2324 = vmin.f32 %v2260, 6.0
        %v2325 = vmin.f32 %v2261, 6.0
        %v2326 = vmin.f32 %v2262, 6.0
        %v2327 = vmin.f32 %v2263, 6.0
        %v2328 = vmin.f32 %v2264, 6.0
        %v2329 = vmin.f32 %v2265, 6.0
        %v2330 = vmin.f32 %v2266, 6.0
        %v2331 = vmin.f32 %v2267, 6.0
        %v2332 = vmin.f32 %v2268, 6.0
        %v2333 = vmin.f32 %v2269, 6.0
        %v2334 = vmin.f32 %v2270, 6.0
        %v2335 = vmin.f32 %v2271, 6.0
        %v2336 = vmin.f32 %v2272, 6.0
        %v2337 = vmin.f32 %v2273, 6.0
        %v2338 = vmin.f32 %v2274, 6.0
        %v2339 = vmin.f32 %v2275, 6.0
        %v2340 = vmin.f32 %v2276, 6.0
        %v2341 = vmin.f32 %v2277, 6.0
        %v2342 = vmin.f32 %v2278, 6.0
        %v2343 = vmin.f32 %v2279, 6.0
        %v2344 = vmin.f32 %v2280, 6.0
        %v2345 = vmin.f32 %v2281, 6.0
        %v2346 = vmin.f32 %v2282, 6.0
        %v2347 = vmin.f32 %v2283, 6.0
        %v2348 = vmin.f32 %v2284, 6.0
        %v2349 = vmin.f32 %v2285, 6.0
        %v2350 = vmin.f32 %v2286, 6.0
        %v2351 = vmin.f32 %v2287, 6.0
        %v2352 = vmin.f32 %v2288, 6.0
        %v2353 = vmin.f32 %v2289, 6.0
        %v2354 = vmin.f32 %v2290, 6.0
        %v2355 = vmin.f32 %v2291, 6.0
        %v2356 = vmin.f32 %v2292, 6.0
        %v2357 = vmin.f32 %v2293, 6.0
        %v2358 = vmin.f32 %v2294, 6.0
        %v2359 = vmin.f32 %v2295, 6.0
        %v2360 = vmin.f32 %v2296, 6.0
        %v2361 = vmin.f32 %v2297, 6.0
        %v2362 = vmin.f32 %v2298, 6.0
        %v2363 = vmin.f32 %v2299, 6.0
        %v2364 = vmin.f32 %v2300, 6.0
        %v2365 = vmin.f32 %v2301, 6.0
        %v2366 = vmin.f32 %v2302, 6.0
        %v2367 = vmin.f32 %v2303, 6.0
        %v2368 = vmin.f32 %v2304, 6.0
        %v2369 = vmin.f32 %v2305, 6.0
        %v2370 = vmin.f32 %v2306, 6.0
        %v2371 = vmul.f32 %v2020, %v2307
        %v2372 = vmul.f32 %v2022, %v2308
        %v2373 = vmul.f32 %v2025, %v2309
        %v2374 = vmul.f32 %v2027, %v2310
        %v2375 = vmul.f32 %v2030, %v2311
        %v2376 = vmul.f32 %v2032, %v2312
        %v2377 = vmul.f32 %v2035, %v2313
        %v2378 = vmul.f32 %v2037, %v2314
        %v2379 = vmul.f32 %v2040, %v2315
        %v2380 = vmul.f32 %v2042, %v2316
        %v2381 = vmul.f32 %v2045, %v2317
        %v2382 = vmul.f32 %v2047, %v2318
        %v2383 = vmul.f32 %v2050, %v2319
        %v2384 = vmul.f32 %v2052, %v2320
        %v2385 = vmul.f32 %v2055, %v2321
        %v2386 = vmul.f32 %v2057, %v2322
        %v2387 = vmul.f32 %v2060, %v2323
        %v2388 = vmul.f32 %v2062, %v2324
        %v2389 = vmul.f32 %v2065, %v2325
        %v2390 = vmul.f32 %v2067, %v2326
        %v2391 = vmul.f32 %v2070, %v2327
        %v2392 = vmul.f32 %v2072, %v2328
        %v2393 = vmul.f32 %v2075, %v2329
        %v2394 = vmul.f32 %v2077, %v2330
        %v2395 = vmul.f32 %v2080, %v2331
        %v2396 = vmul.f32 %v2082, %v2332
        %v2397 = vmul.f32 %v2085, %v2333
        %v2398 = vmul.f32 %v2087, %v2334
        %v2399 = vmul.f32 %v2090, %v2335
        %v2400 = vmul.f32 %v2092, %v2336
        %v2401 = vmul.f32 %v2095, %v2337
        %v2402 = vmul.f32 %v2097, %v2338
        %v2403 = vmul.f32 %v2100, %v2339
        %v2404 = vmul.f32 %v2102, %v2340
        %v2405 = vmul.f32 %v2105, %v2341
        %v2406 = vmul.f32 %v2107, %v2342
        %v2407 = vmul.f32 %v2110, %v2343
        %v2408 = vmul.f32 %v2112, %v2344
        %v2409 = vmul.f32 %v2115, %v2345
        %v2410 = vmul.f32 %v2117, %v2346
        %v2411 = vmul.f32 %v2120, %v2347
        %v2412 = vmul.f32 %v2122, %v2348
        %v2413 = vmul.f32 %v2125, %v2349
        %v2414 = vmul.f32 %v2127, %v2350
        %v2415 = vmul.f32 %v2130, %v2351
        %v2416 = vmul.f32 %v2132, %v2352
        %v2417 = vmul.f32 %v2135, %v2353
        %v2418 = vmul.f32 %v2137, %v2354
        %v2419 = vmul.f32 %v2140, %v2355
        %v2420 = vmul.f32 %v2142, %v2356
        %v2421 = vmul.f32 %v2145, %v2357
        %v2422 = vmul.f32 %v2147, %v2358
        %v2423 = vmul.f32 %v2150, %v2359
        %v2424 = vmul.f32 %v2152, %v2360
        %v2425 = vmul.f32 %v2155, %v2361
        %v2426 = vmul.f32 %v2157, %v2362
        %v2427 = vmul.f32 %v2160, %v2363
        %v2428 = vmul.f32 %v2162, %v2364
        %v2429 = vmul.f32 %v2165, %v2365
        %v2430 = vmul.f32 %v2167, %v2366
        %v2431 = vmul.f32 %v2170, %v2367
        %v2432 = vmul.f32 %v2172, %v2368
        %v2433 = vmul.f32 %v2175, %v2369
        %v2434 = vmul.f32 %v2177, %v2370
        %v2435 = vmul.f32 %v2371, 0.16666667
        %v2436 = vmul.f32 %v2372, 0.16666667
        %v2437 = vmul.f32 %v2373, 0.16666667
        %v2438 = vmul.f32 %v2374, 0.16666667
        %v2439 = vmul.f32 %v2375, 0.16666667
        %v2440 = vmul.f32 %v2376, 0.16666667
        %v2441 = vmul.f32 %v2377, 0.16666667
        %v2442 = vmul.f32 %v2378, 0.16666667
        %v2443 = vmul.f32 %v2379, 0.16666667
        %v2444 = vmul.f32 %v2380, 0.16666667
        %v2445 = vmul.f32 %v2381, 0.16666667
        %v2446 = vmul.f32 %v2382, 0.16666667
        %v2447 = vmul.f32 %v2383, 0.16666667
        %v2448 = vmul.f32 %v2384, 0.16666667
        %v2449 = vmul.f32 %v2385, 0.16666667
        %v2450 = vmul.f32 %v2386, 0.16666667
        %v2451 = vmul.f32 %v2387, 0.16666667
        %v2452 = vmul.f32 %v2388, 0.16666667
        %v2453 = vmul.f32 %v2389, 0.16666667
        %v2454 = vmul.f32 %v2390, 0.16666667
        %v2455 = vmul.f32 %v2391, 0.16666667
        %v2456 = vmul.f32 %v2392, 0.16666667
        %v2457 = vmul.f32 %v2393, 0.16666667
        %v2458 = vmul.f32 %v2394, 0.16666667
        %v2459 = vmul.f32 %v2395, 0.16666667
        %v2460 = vmul.f32 %v2396, 0.16666667
        %v2461 = vmul.f32 %v2397, 0.16666667
        %v2462 = vmul.f32 %v2398, 0.16666667
        %v2463 = vmul.f32 %v2399, 0.16666667
        %v2464 = vmul.f32 %v2400, 0.16666667
        %v2465 = vmul.f32 %v2401, 0.16666667
        %v2466 = vmul.f32 %v2402, 0.16666667
        %v2467 = vmul.f32 %v2403, 0.16666667
        %v2468 = vmul.f32 %v2404, 0.16666667
        %v2469 = vmul.f32 %v2405, 0.16666667
        %v2470 = vmul.f32 %v2406, 0.16666667
        %v2471 = vmul.f32 %v2407, 0.16666667
        %v2472 = vmul.f32 %v2408, 0.16666667
        %v2473 = vmul.f32 %v2409, 0.16666667
        %v2474 = vmul.f32 %v2410, 0.16666667
        %v2475 = vmul.f32 %v2411, 0.16666667
        %v2476 = vmul.f32 %v2412, 0.16666667
        %v2477 = vmul.f32 %v2413, 0.16666667
        %v2478 = vmul.f32 %v2414, 0.16666667
        %v2479 = vmul.f32 %v2415, 0.16666667
        %v2480 = vmul.f32 %v2416, 0.16666667
        %v2481 = vmul.f32 %v2417, 0.16666667
        %v2482 = vmul.f32 %v2418, 0.16666667
        %v2483 = vmul.f32 %v2419, 0.16666667
        %v2484 = vmul.f32 %v2420, 0.16666667
        %v2485 = vmul.f32 %v2421, 0.16666667
        %v2486 = vmul.f32 %v2422, 0.16666667
        %v2487 = vmul.f32 %v2423, 0.16666667
        %v2488 = vmul.f32 %v2424, 0.16666667
        %v2489 = vmul.f32 %v2425, 0.16666667
        %v2490 = vmul.f32 %v2426, 0.16666667
        %v2491 = vmul.f32 %v2427, 0.16666667
        %v2492 = vmul.f32 %v2428, 0.16666667
        %v2493 = vmul.f32 %v2429, 0.16666667
        %v2494 = vmul.f32 %v2430, 0.16666667
        %v2495 = vmul.f32 %v2431, 0.16666667
        %v2496 = vmul.f32 %v2432, 0.16666667
        %v2497 = vmul.f32 %v2433, 0.16666667
        %v2498 = vmul.f32 %v2434, 0.16666667
        %v2499 = vpack.c.bf16 %v2435, %v2435
        %v2500 = vpack.c.bf16 %v2436, %v2436
        %v2501 = vpack.c.bf16 %v2437, %v2437
        %v2502 = vpack.c.bf16 %v2438, %v2438
        %v2503 = vpack.c.bf16 %v2439, %v2439
        %v2504 = vpack.c.bf16 %v2440, %v2440
        %v2505 = vpack.c.bf16 %v2441, %v2441
        %v2506 = vpack.c.bf16 %v2442, %v2442
        %v2507 = vpack.c.bf16 %v2443, %v2443
        %v2508 = vpack.c.bf16 %v2444, %v2444
        %v2509 = vpack.c.bf16 %v2445, %v2445
        %v2510 = vpack.c.bf16 %v2446, %v2446
        %v2511 = vpack.c.bf16 %v2447, %v2447
        %v2512 = vpack.c.bf16 %v2448, %v2448
        %v2513 = vpack.c.bf16 %v2449, %v2449
        %v2514 = vpack.c.bf16 %v2450, %v2450
        %v2515 = vpack.c.bf16 %v2451, %v2451
        %v2516 = vpack.c.bf16 %v2452, %v2452
        %v2517 = vpack.c.bf16 %v2453, %v2453
        %v2518 = vpack.c.bf16 %v2454, %v2454
        %v2519 = vpack.c.bf16 %v2455, %v2455
        %v2520 = vpack.c.bf16 %v2456, %v2456
        %v2521 = vpack.c.bf16 %v2457, %v2457
        %v2522 = vpack.c.bf16 %v2458, %v2458
        %v2523 = vpack.c.bf16 %v2459, %v2459
        %v2524 = vpack.c.bf16 %v2460, %v2460
        %v2525 = vpack.c.bf16 %v2461, %v2461
        %v2526 = vpack.c.bf16 %v2462, %v2462
        %v2527 = vpack.c.bf16 %v2463, %v2463
        %v2528 = vpack.c.bf16 %v2464, %v2464
        %v2529 = vpack.c.bf16 %v2465, %v2465
        %v2530 = vpack.c.bf16 %v2466, %v2466
        %v2531 = vpack.c.bf16 %v2467, %v2467
        %v2532 = vpack.c.bf16 %v2468, %v2468
        %v2533 = vpack.c.bf16 %v2469, %v2469
        %v2534 = vpack.c.bf16 %v2470, %v2470
        %v2535 = vpack.c.bf16 %v2471, %v2471
        %v2536 = vpack.c.bf16 %v2472, %v2472
        %v2537 = vpack.c.bf16 %v2473, %v2473
        %v2538 = vpack.c.bf16 %v2474, %v2474
        %v2539 = vpack.c.bf16 %v2475, %v2475
        %v2540 = vpack.c.bf16 %v2476, %v2476
        %v2541 = vpack.c.bf16 %v2477, %v2477
        %v2542 = vpack.c.bf16 %v2478, %v2478
        %v2543 = vpack.c.bf16 %v2479, %v2479
        %v2544 = vpack.c.bf16 %v2480, %v2480
        %v2545 = vpack.c.bf16 %v2481, %v2481
        %v2546 = vpack.c.bf16 %v2482, %v2482
        %v2547 = vpack.c.bf16 %v2483, %v2483
        %v2548 = vpack.c.bf16 %v2484, %v2484
        %v2549 = vpack.c.bf16 %v2485, %v2485
        %v2550 = vpack.c.bf16 %v2486, %v2486
        %v2551 = vpack.c.bf16 %v2487, %v2487
        %v2552 = vpack.c.bf16 %v2488, %v2488
        %v2553 = vpack.c.bf16 %v2489, %v2489
        %v2554 = vpack.c.bf16 %v2490, %v2490
        %v2555 = vpack.c.bf16 %v2491, %v2491
        %v2556 = vpack.c.bf16 %v2492, %v2492
        %v2557 = vpack.c.bf16 %v2493, %v2493
        %v2558 = vpack.c.bf16 %v2494, %v2494
        %v2559 = vpack.c.bf16 %v2495, %v2495
        %v2560 = vpack.c.bf16 %v2496, %v2496
        %v2561 = vpack.c.bf16 %v2497, %v2497
        %v2562 = vpack.c.bf16 %v2498, %v2498
        %2563 = vst [vmem:[%s505] sm:$0xf] %v2499
        %2564 = vst [vmem:[%s505 + $0x4] sm:$0xf] %v2500
        %2565 = vst [vmem:[%s505 + $0x8] sm:$0xf] %v2501
        %2566 = vst [vmem:[%s505 + $0xc] sm:$0xf] %v2502
        %2567 = vst [vmem:[%s505 + $0x10] sm:$0xf] %v2503
        %2568 = vst [vmem:[%s505 + $0x14] sm:$0xf] %v2504
        %2569 = vst [vmem:[%s505 + $0x18] sm:$0xf] %v2505
        %2570 = vst [vmem:[%s505 + $0x1c] sm:$0xf] %v2506
        %2571 = vst [vmem:[%s505 + $0x20] sm:$0xf] %v2507
        %2572 = vst [vmem:[%s505 + $0x24] sm:$0xf] %v2508
        %2573 = vst [vmem:[%s505 + $0x28] sm:$0xf] %v2509
        %2574 = vst [vmem:[%s505 + $0x2c] sm:$0xf] %v2510
        %2575 = vst [vmem:[%s505 + $0x30] sm:$0xf] %v2511
        %2576 = vst [vmem:[%s505 + $0x34] sm:$0xf] %v2512
        %2577 = vst [vmem:[%s505 + $0x38] sm:$0xf] %v2513
        %2578 = vst [vmem:[%s505 + $0x3c] sm:$0xf] %v2514
        %2579 = vst [vmem:[%s505 + $0x40] sm:$0xf] %v2515
        %2580 = vst [vmem:[%s505 + $0x44] sm:$0xf] %v2516
        %2581 = vst [vmem:[%s505 + $0x48] sm:$0xf] %v2517
        %2582 = vst [vmem:[%s505 + $0x4c] sm:$0xf] %v2518
        %2583 = vst [vmem:[%s505 + $0x50] sm:$0xf] %v2519
        %2584 = vst [vmem:[%s505 + $0x54] sm:$0xf] %v2520
        %2585 = vst [vmem:[%s505 + $0x58] sm:$0xf] %v2521
        %2586 = vst [vmem:[%s505 + $0x5c] sm:$0xf] %v2522
        %2587 = vst [vmem:[%s505 + $0x60] sm:$0xf] %v2523
        %2588 = vst [vmem:[%s505 + $0x64] sm:$0xf] %v2524
        %2589 = vst [vmem:[%s505 + $0x68] sm:$0xf] %v2525
        %2590 = vst [vmem:[%s505 + $0x6c] sm:$0xf] %v2526
        %2591 = vst [vmem:[%s505 + $0x70] sm:$0xf] %v2527
        %2592 = vst [vmem:[%s505 + $0x74] sm:$0xf] %v2528
        %2593 = vst [vmem:[%s505 + $0x78] sm:$0xf] %v2529
        %2594 = vst [vmem:[%s505 + $0x7c] sm:$0xf] %v2530
        %2595 = vst [vmem:[%s505 + $0x80] sm:$0xf] %v2531
        %2596 = vst [vmem:[%s505 + $0x84] sm:$0xf] %v2532
        %2597 = vst [vmem:[%s505 + $0x88] sm:$0xf] %v2533
        %2598 = vst [vmem:[%s505 + $0x8c] sm:$0xf] %v2534
        %2599 = vst [vmem:[%s505 + $0x90] sm:$0xf] %v2535
        %2600 = vst [vmem:[%s505 + $0x94] sm:$0xf] %v2536
        %2601 = vst [vmem:[%s505 + $0x98] sm:$0xf] %v2537
        %2602 = vst [vmem:[%s505 + $0x9c] sm:$0xf] %v2538
        %2603 = vst [vmem:[%s505 + $0xa0] sm:$0xf] %v2539
        %2604 = vst [vmem:[%s505 + $0xa4] sm:$0xf] %v2540
        %2605 = vst [vmem:[%s505 + $0xa8] sm:$0xf] %v2541
        %2606 = vst [vmem:[%s505 + $0xac] sm:$0xf] %v2542
        %2607 = vst [vmem:[%s505 + $0xb0] sm:$0xf] %v2543
        %2608 = vst [vmem:[%s505 + $0xb4] sm:$0xf] %v2544
        %2609 = vst [vmem:[%s505 + $0xb8] sm:$0xf] %v2545
        %2610 = vst [vmem:[%s505 + $0xbc] sm:$0xf] %v2546
        %2611 = vst [vmem:[%s505 + $0xc0] sm:$0xf] %v2547
        %2612 = vst [vmem:[%s505 + $0xc4] sm:$0xf] %v2548
        %2613 = vst [vmem:[%s505 + $0xc8] sm:$0xf] %v2549
        %2614 = vst [vmem:[%s505 + $0xcc] sm:$0xf] %v2550
        %2615 = vst [vmem:[%s505 + $0xd0] sm:$0xf] %v2551
        %2616 = vst [vmem:[%s505 + $0xd4] sm:$0xf] %v2552
        %2617 = vst [vmem:[%s505 + $0xd8] sm:$0xf] %v2553
        %2618 = vst [vmem:[%s505 + $0xdc] sm:$0xf] %v2554
        %2619 = vst [vmem:[%s505 + $0xe0] sm:$0xf] %v2555
        %2620 = vst [vmem:[%s505 + $0xe4] sm:$0xf] %v2556
        %2621 = vst [vmem:[%s505 + $0xe8] sm:$0xf] %v2557
        %2622 = vst [vmem:[%s505 + $0xec] sm:$0xf] %v2558
        %2623 = vst [vmem:[%s505 + $0xf0] sm:$0xf] %v2559
        %2624 = vst [vmem:[%s505 + $0xf4] sm:$0xf] %v2560
        %2625 = vst [vmem:[%s505 + $0xf8] sm:$0xf] %v2561
        %2626 = vst [vmem:[%s505 + $0xfc] sm:$0xf] %v2562
        %s2627 = sand.u32 %s246, 1
        %s2628 = scalar_lea.sflag [#allocation5], %s2627
        %s2629 = sand.u32 %s246, 1
        %s2630 = smul.addr %s2629, 256
        %s2631 = scalar_lea.vmem [#allocation12], %s2630
        // Predicated region
        $region73: #{tpu_custom_call.1} parent=51 // pred_check
          %p2632 = pneg %p256
        $region74: #{tpu_custom_call.1} parent=51 // pred_check_branch
          %2634 = sbr.rel (%p2632) target = $region76
        $region75: #{tpu_custom_call.1} parent=51 // pred_region
          #allocation18 [shape = 'u32[6]{0}', space=smem, size = 0x18, scoped, tag = 'DMA stride descriptor']
          %s2635 = smul.u32 8, %s35
          %s2636 = smul.u32 2, %s36
          %2638 = vsyncadd %s2628, 0
          %s2639 = smul.addr %s2635, 2
          %s2640 = sadd.s32 %s2636, %s2639
          %s2641 = smul.addr %s34, 128
          %s2642 = sadd.s32 %s2640, %s2641
          %s2643 = smul.addr %s2642, 4
          %s2644 = scalar_lea.hbm %s8, %s2643
          %s2646 = sshll.u32 1, 14
          %s2647 = sxor.u32 4294967295, %s2646
          %s2650 = sshll.u32 7, 18
          %s2651 = sxor.u32 4294967295, %s2650
          %s2652 = sand.u32 0, %s2651
          %s2654 = sor.u32 %s2652, 0
          %s2655 = sshll.u32 %s2631, 4
          %s2656 = int_to_ptr.vmem [resolvable:$true] %s2655
          %s2657 = sshll.u32 %s2644, 4
          %s2658 = int_to_ptr.hbm [resolvable:$true] %s2657
          %2664 = sst [smem:[#allocation18]] 1024
          %s2665 = scalar_lea.smem [#allocation18], 1
          %2666 = sst [smem:[%s2665]] 2048
          %s2667 = scalar_lea.smem [#allocation18], 2
          %2668 = sst [smem:[%s2667]] 16
          %s2669 = scalar_lea.smem [#allocation18], 3
          %2670 = sst [smem:[%s2669]] 64
          %s2671 = scalar_lea.smem [#allocation18], 4
          %2672 = sst [smem:[%s2671]] 64
          %s2673 = scalar_lea.smem [#allocation18], 5
          %2674 = sst [smem:[%s2673]] 4
          %2676 = dma.general %s2656, 4096, %s2658, %s2628, [#allocation17], [#allocation18], %s2654, 0
        $region76: #{tpu_custom_call.1} parent=51 // pred_fallthru
          _
      $region52: #{tpu_custom_call.1} parent=5 // pred_fallthru
        _
      %p2677 = scmp.le.s32.totalorder 2, %s24
      // Predicated region
      $region77: #{tpu_custom_call.1} parent=5 // pred_check
        %p2678 = pneg %p2677
      $region78: #{tpu_custom_call.1} parent=5 // pred_check_branch
        %2680 = sbr.rel (%p2678) target = $region80
      $region79: #{tpu_custom_call.1} parent=5 // pred_region
        %s2681 = ssub.s32 %s24, 2
        // Predicated region
        $region81: #{tpu_custom_call.1} parent=79 // pred_check
          %p2682 = pneg %p262
        $region82: #{tpu_custom_call.1} parent=79 // pred_check_branch
          %2684 = sbr.rel (%p2682) target = $region84
        $region83: #{tpu_custom_call.1} parent=79 // pred_region
          %s2685 = sand.u32 %s247, 1
          %s2686 = scalar_lea.sflag [#allocation5], %s2685
          %s2687 = sand.u32 %s247, 1
          %s2688 = smul.addr %s2687, 256
          %s2689 = scalar_lea.vmem [#allocation12], %s2688
          %2691 = dma.done %s2686, 4096
        $region84: #{tpu_custom_call.1} parent=79 // pred_fallthru
          _
      $region80: #{tpu_custom_call.1} parent=5 // pred_fallthru
        _
    $region6: #{tpu_custom_call.1} parent=1 // loop_footer
      %s28 = sadd.s32 1, %s24
    $region7: #{tpu_custom_call.1} parent=1 // loop_footer_branch
      %23 = sbr.rel target = $region3
    $region8: #{tpu_custom_call.1} parent=1 // loop_exit
      _
    %2692 = vsyncpa [#allocation4], 1
    %s2693 = scalar_lea.sflag [#allocation4], 1
    %2694 = vsyncpa %s2693, 1
    %2695 = vsyncpa [#allocation7], 1
    %s2696 = scalar_lea.sflag [#allocation7], 1
    %2697 = vsyncpa %s2696, 1
    %2698 = vsyncpa [#allocation10], 1
    %2699 = vsyncpa [#allocation5], 1
    %s2700 = scalar_lea.sflag [#allocation5], 1
    %2701 = vsyncpa %s2700, 1

</llo_original>
